<compile_context>
chip_gen: v6e
topology: v6e:2x2x1
jax: 0.10.0
libtpu: 0.0.40
codegen_flags: <defaults>
</compile_context>

<pallas_src>
import jax
import jax.numpy as jnp
from jax.experimental import pallas as pl
from jax.experimental.pallas import tpu as pltpu


# Alignments: K is 256-aligned (full-width MXU pushes on v6e/v7x, still fine on
# v5e's 4x128^2), M/N are 128-aligned (lane-dense, (8,128) tiling rule).
_M_ALIGN, _N_ALIGN, _K_ALIGN = 128, 128, 256
# Tile caps (sweepable).  At the caps, bf16 inputs + f32 output + acc scratch
# double-buffered is ~7 MiB of VMEM -- safe on every generation incl. v7x.
_TM_MAX, _TN_MAX, _TK_MAX = 512, 512, 1024

# Below this M*N*K a pallas_call is pure overhead vs a fused XLA dot.
_PALLAS_MIN_WORK = 1 << 20


def _round_up(n, m):
    return ((n + m - 1) // m) * m


def _largest_divisor_tile(padded, cap, align):
    """Largest tile t <= cap, multiple of `align`, that divides `padded`."""
    t = (min(cap, padded) // align) * align
    while t > align and padded % t:
        t -= align
    return max(t, align)


def _linear_kernel_acc(x_ref, wt_ref, b_ref, o_ref, acc_ref):
    # Non-f32 output: accumulate in f32 scratch, add bias + cast at the end.
    # x_ref: (TM,TK) bf16   wt_ref: (TK,TN) bf16   b_ref: (1,TN) f32
    k = pl.program_id(2)

    @pl.when(k == 0)
    def _init():
        acc_ref[...] = jnp.zeros_like(acc_ref)

    acc_ref[...] += jnp.dot(x_ref[...], wt_ref[...],
                            preferred_element_type=jnp.float32)

    @pl.when(k == pl.num_programs(2) - 1)
    def _finalize():
        o_ref[...] = (acc_ref[...] + b_ref[...]).astype(o_ref.dtype)


def _linear_kernel_f32_out(x_ref, wt_ref, b_ref, o_ref):
    # f32 output: o_ref is VMEM-resident across the K axis (out BlockSpec is
    # independent of k), so accumulate directly into it -- no scratch, no
    # finalize copy.  Initialize with the bias on the first K step.
    k = pl.program_id(2)

    @pl.when(k == 0)
    def _init():
        o_ref[...] = jnp.broadcast_to(b_ref[...], o_ref.shape)

    o_ref[...] += jnp.dot(x_ref[...], wt_ref[...],
                          preferred_element_type=jnp.float32)


def linear_pallas(x, wt, b, *, logical_n=None, compute_dtype=jnp.bfloat16,
                  out_dtype=None):
    """y = x @ wt[:K, :N] + b[:N], with wt stored [in_features, out_features].

    `wt`/`b` may already be bf16 and padded to alignment multiples (done once
    at module init) so the hot path never re-casts or re-pads the weights.
    """
    M, K = x.shape
    Kw, Nw = wt.shape
    N = int(logical_n) if logical_n is not None else Nw
    assert Kw >= K and Nw >= N, (x.shape, wt.shape, N)
    out_dtype = jnp.dtype(out_dtype or x.dtype)

    b2 = jnp.asarray(b, jnp.float32).reshape(1, -1)

    # Small-layer fast path: skip the custom-call boundary, let XLA fuse.
    if M * N * K <= _PALLAS_MIN_WORK:
        acc = jnp.dot(x.astype(compute_dtype), wt[:K, :N].astype(compute_dtype),
                      preferred_element_type=jnp.float32)
        return (acc + b2[:, :N]).astype(out_dtype)

    # ---- Tile / grid selection ---------------------------------------------
    Mp = _round_up(M, _M_ALIGN)
    Np = _round_up(Nw, _N_ALIGN)
    Kp = _round_up(max(K, Kw), _K_ALIGN)
    tm = _largest_divisor_tile(Mp, _TM_MAX, _M_ALIGN)
    tn = _largest_divisor_tile(Np, _TN_MAX, _N_ALIGN)
    tk = _largest_divisor_tile(Kp, _TK_MAX, _K_ALIGN)

    # v7x has 2 TensorCores: expose >= 2 parallel blocks when possible.
    # Prefer splitting N (output stores stay lane-dense at >=128).
    if (Mp // tm) * (Np // tn) < 2:
        if tn % 256 == 0:
            tn //= 2
        elif tm % 256 == 0:
            tm //= 2

    grid = (Mp // tm, Np // tn, Kp // tk)  # reduction (K) axis last

    # ---- Per-call operand prep (weights already cast/padded at init) -------
    xp = x.astype(compute_dtype)
    if (Mp, Kp) != (M, K):
        xp = jnp.pad(xp, ((0, Mp - M), (0, Kp - K)))
    wtp = wt.astype(compute_dtype)            # no-op when pre-cast at init
    if (Kp, Np) != (Kw, Nw):
        wtp = jnp.pad(wtp, ((0, Kp - Kw), (0, Np - Nw)))
    bp = b2 if b2.shape[1] == Np else jnp.pad(b2, ((0, 0), (0, Np - b2.shape[1])))

    # ---- Kernel selection & VMEM budget -------------------------------------
    f32_out = out_dtype == jnp.dtype(jnp.float32)
    kernel = _linear_kernel_f32_out if f32_out else _linear_kernel_acc
    scratch = [] if f32_out else [pltpu.VMEM((tm, tn), jnp.float32)]

    in_isz = jnp.dtype(compute_dtype).itemsize
    vmem_need = (2 * (tm * tk + tk * tn) * in_isz        # double-buffered inputs
                 + 2 * tn * 4                            # bias blocks
                 + 2 * tm * tn * out_dtype.itemsize      # double-buffered output
                 + (0 if f32_out else tm * tn * 4))      # f32 accumulator
    # Explicit limit: computed need + headroom, capped well under v7x's 64 MiB.
    vmem_limit = int(min(48 * 1024 * 1024,
                         max(2 * vmem_need + (8 << 20), 16 << 20)))

    cost = pl.CostEstimate(
        flops=2 * Mp * Np * Kp,
        transcendentals=0,
        # x is re-streamed once per N block, wt once per M block.
        bytes_accessed=(Mp * Kp * in_isz * (Np // tn)
                        + Kp * Np * in_isz * (Mp // tm)
                        + Np * 4 + Mp * Np * out_dtype.itemsize),
    )

    # TODO(synk): if a profile shows the weight DMA exposed (small M), add
    # pipeline_mode=pl.Buffered(3) on the weight BlockSpec.
    out = pl.pallas_call(
        kernel,
        out_shape=jax.ShapeDtypeStruct((Mp, Np), out_dtype),
        grid=grid,
        in_specs=[
            pl.BlockSpec((tm, tk), lambda i, j, k: (i, k)),
            pl.BlockSpec((tk, tn), lambda i, j, k: (k, j)),
            pl.BlockSpec((1, tn), lambda i, j, k: (0, j)),
        ],
        out_specs=pl.BlockSpec((tm, tn), lambda i, j, k: (i, j)),
        scratch_shapes=scratch,
        compiler_params=pltpu.CompilerParams(
            dimension_semantics=("parallel", "parallel", "arbitrary"),
            vmem_limit_bytes=vmem_limit),
        cost_estimate=cost,
    )(xp, wtp, bp)

    if (Mp, Np) != (M, N):
        out = out[:M, :N]
    return out


class SavablePallas:
    """JAX/Pallas mirror of Savable: wraps a module fn and delegates forward."""

    def __init__(self, module_fn, params, init_classes=()):
        self._module_fn = module_fn
        self._params = params
        self.init_classes = init_classes  # API parity; unused here

    def get_base(self):
        return self._module_fn

    def __call__(self, *args, **kwargs):
        # forward(*args, **kwargs) -> self.module(*args, **kwargs)
        return self._module_fn(self._params, *args, **kwargs)

    def paramcount(self):
        return sum(int(p.size) for p in jax.tree_util.tree_leaves(self._params))

    # TODO(synk): save/load/clone/reinit are checkpoint/state-dict utilities
    # with no forward-pass compute; omitted (no Pallas equivalent needed).


def make_linear_module(w, b, *, compute_dtype=jnp.bfloat16):
    """Build the wrapped 'Linear'.

    Logical params (for paramcount/state parity) stay f32/unpadded; the hot-path
    copies (transposed to [in, out], bf16, padded to kernel alignment) are
    prepared ONCE here so no per-call weight cast/pad ever hits HBM.
    """
    w = jnp.asarray(w)
    b = jnp.asarray(b)
    out_f, in_f = w.shape
    params = {"weight": w, "bias": b}

    Kp = _round_up(in_f, _K_ALIGN)
    Np = _round_up(out_f, _N_ALIGN)
    wt_hot = jnp.pad(w.T.astype(compute_dtype),
                     ((0, Kp - in_f), (0, Np - out_f)))
    b_hot = jnp.pad(b.astype(jnp.float32).reshape(1, -1),
                    ((0, 0), (0, Np - out_f)))

    @jax.jit
    def linear_module(p, x):
        del p  # padded/bf16 hot copies are baked in; p kept for API parity
        return linear_pallas(x, wt_hot, b_hot, logical_n=out_f,
                             compute_dtype=compute_dtype)

    return SavablePallas(linear_module, params)


if __name__ == "__main__":
    key = jax.random.PRNGKey(0)
    k_x, k_w, k_b = jax.random.split(key, 3)

    # Small but alignment-friendly shapes -> exercises the pipelined Pallas path
    # (grid becomes (1, 2, 1) after the megacore N-split).
    batch, in_f, out_f = 256, 512, 256
    x = jax.random.normal(k_x, (batch, in_f), dtype=jnp.float32)

    bound = 1.0 / (in_f ** 0.5)  # nn.Linear default-style init
    w = jax.random.uniform(k_w, (out_f, in_f), jnp.float32, -bound, bound)
    b = jax.random.uniform(k_b, (out_f,), jnp.float32, -bound, bound)

    model = make_linear_module(w, b)

    y = model(x)
    y = jax.block_until_ready(y)

    # Reference with the same bf16 operand rounding, f32 accumulation.
    x_bf = x.astype(jnp.bfloat16).astype(jnp.float32)
    w_bf = w.astype(jnp.bfloat16).astype(jnp.float32)
    y_ref = x_bf @ w_bf.T + b

    assert y.shape == (batch, out_f)
    assert jnp.allclose(y, y_ref, atol=1e-2, rtol=1e-2), "f32-out mismatch"

    # Exercise the bf16-output (acc-scratch) kernel variant as well.
    y_bf = jax.block_until_ready(linear_pallas(x.astype(jnp.bfloat16), w.T, b))
    assert y_bf.dtype == jnp.bfloat16
    assert jnp.allclose(y_bf.astype(jnp.float32), y_ref, atol=3e-2, rtol=3e-2), \
        "bf16-out mismatch"

    # Sanity-check the small-GEMM bypass path (no Pallas call).
    xs = x[:8, :32]
    ws = w[:32, :32]
    bs = b[:32]
    ys = jax.block_until_ready(linear_pallas(xs, ws.T, bs))
    ys_ref = (xs.astype(jnp.bfloat16).astype(jnp.float32)
              @ ws.astype(jnp.bfloat16).astype(jnp.float32).T + bs)
    assert jnp.allclose(ys, ys_ref, atol=1e-2, rtol=1e-2)

    assert model.paramcount() == out_f * in_f + out_f

    print("KERNEL_OK")
</pallas_src>

<mosaic_0001>
module attributes {stable_mosaic.version = 11 : i64} {
  func.func @_linear_kernel_f32_out(%arg0: i32, %arg1: i32, %arg2: i32, %arg3: memref<256x512xbf16, #tpu.memory_space<vmem>>, %arg4: memref<512x128xbf16, #tpu.memory_space<vmem>>, %arg5: memref<1x128xf32, #tpu.memory_space<vmem>>, %arg6: memref<256x128xf32, #tpu.memory_space<vmem>>) attributes {dimension_semantics = [#tpu.dimension_semantics<parallel>, #tpu.dimension_semantics<parallel>, #tpu.dimension_semantics<arbitrary>], iteration_bounds = array<i64: 1, 2, 1>, scalar_prefetch = 0 : i64, scratch_operands = 0 : i64, tpu.core_type = #tpu.core_type<tc>, window_params = [{transform_indices = @transform_0, window_bounds = array<i64: 256, 512>}, {transform_indices = @transform_1, window_bounds = array<i64: 512, 128>}, {transform_indices = @transform_2, window_bounds = array<i64: 1, 128>}, {transform_indices = @transform_3, window_bounds = array<i64: 256, 128>}]} {
    %c0_i32 = arith.constant 0 : i32
    %0 = arith.cmpi eq, %arg2, %c0_i32 : i32
    %1 = arith.extui %0 : i1 to i32
    %c0_i32_0 = arith.constant 0 : i32
    %2 = arith.cmpi ne, %1, %c0_i32_0 : i32
    scf.if %2 {
      %c0_8 = arith.constant 0 : index
      %c0_9 = arith.constant 0 : index
      %9 = vector.load %arg5[%c0_8, %c0_9] : memref<1x128xf32, #tpu.memory_space<vmem>>, vector<1x128xf32>
      %10 = vector.shape_cast %9 : vector<1x128xf32> to vector<1x128xf32>
      %11 = vector.broadcast %10 : vector<1x128xf32> to vector<256x128xf32>
      %c0_10 = arith.constant 0 : index
      %c0_11 = arith.constant 0 : index
      %12 = vector.load %arg6[%c0_10, %c0_11] : memref<256x128xf32, #tpu.memory_space<vmem>>, vector<256x128xf32>
      tpu.vector_store %arg6[%c0_10, %c0_11], %11 {strides = array<i32>} : memref<256x128xf32, #tpu.memory_space<vmem>>, vector<256x128xf32>,
    } else {
    }
    %c0 = arith.constant 0 : index
    %c0_1 = arith.constant 0 : index
    %3 = vector.load %arg6[%c0, %c0_1] : memref<256x128xf32, #tpu.memory_space<vmem>>, vector<256x128xf32>
    %c0_2 = arith.constant 0 : index
    %c0_3 = arith.constant 0 : index
    %4 = vector.load %arg3[%c0_2, %c0_3] : memref<256x512xbf16, #tpu.memory_space<vmem>>, vector<256x512xbf16>
    %c0_4 = arith.constant 0 : index
    %c0_5 = arith.constant 0 : index
    %5 = vector.load %arg4[%c0_4, %c0_5] : memref<512x128xbf16, #tpu.memory_space<vmem>>, vector<512x128xbf16>
    %cst = arith.constant dense<0.000000e+00> : vector<256x128xf32>
    %6 = tpu.matmul %4, %5, %cst {dimension_numbers = #tpu.dot_dimension_numbers<[1], [0], [0], [1], [0, 0, 1, 1], [], []>} : vector<256x512xbf16>, vector<512x128xbf16>, vector<256x128xf32> -> vector<256x128xf32>
    %7 = arith.addf %3, %6 : vector<256x128xf32>
    %c0_6 = arith.constant 0 : index
    %c0_7 = arith.constant 0 : index
    %8 = vector.load %arg6[%c0_6, %c0_7] : memref<256x128xf32, #tpu.memory_space<vmem>>, vector<256x128xf32>
    tpu.vector_store %arg6[%c0_6, %c0_7], %7 {strides = array<i32>} : memref<256x128xf32, #tpu.memory_space<vmem>>, vector<256x128xf32>,
    return
  }
  func.func @transform_0(%arg0: i32, %arg1: i32, %arg2: i32) -> (i32, i32) {
    %c0_i32 = arith.constant 0 : i32
    return %arg0, %arg2 : i32, i32
  }
  func.func @transform_1(%arg0: i32, %arg1: i32, %arg2: i32) -> (i32, i32) {
    %c0_i32 = arith.constant 0 : i32
    return %arg2, %arg1 : i32, i32
  }
  func.func @transform_2(%arg0: i32, %arg1: i32, %arg2: i32) -> (i32, i32) {
    %c0_i32 = arith.constant 0 : i32
    %c0_i32_0 = arith.constant 0 : i32
    return %c0_i32, %arg1 : i32, i32
  }
  func.func @transform_3(%arg0: i32, %arg1: i32, %arg2: i32) -> (i32, i32) {
    %c0_i32 = arith.constant 0 : i32
    return %arg0, %arg1 : i32, i32
  }
}

</mosaic_0001>

<llo_original>
// kernel: linear_module.1
$region0: #{linear_module.1}
  #allocation0 [shape = 'u32[]', space=smem, size = 0x4, offset = 0x4, fixed_abs, tag = 'smem constant byte address 0x4 - core index']
  #allocation1 [shape = 'u32[144,128]{1,0:T(1,128)}', space=vmem, size = 0x12000, scoped, tag = 'internal scratch']
  %s0 = inlined_call_operand.vmem [shape: bf16[256,512], index: 0, kind: input, shape index: {}]
  %s1 = inlined_call_operand.vmem [shape: bf16[512,256], index: 1, kind: input, shape index: {}]
  %s2 = inlined_call_operand.vmem [shape: f32[1,256], index: 2, kind: input, shape index: {}]
  %s3 = inlined_call_operand.hbm [shape: f32[256,256], index: 3, kind: output, shape index: {}]
  %s4 = sld [smem:[#allocation0]]
  $region90: #{linear_module.1} parent=0
    _
  %s6 = ssub.s32 1, %s4
  %s7 = scalar_select 0, %s6, %s4
  $region1: #{linear_module.1} parent=0
    #allocation2 [shape = 'u8[262144]{0}', space=vmem, size = 0x40000, scoped, tag = 'input window, operand 1']
    #allocation3 [shape = 'u8[262144]{0}', space=vmem, size = 0x40000, scoped, tag = 'output window, operand 0']
    #allocation4 [shape = 's32[2]{0}', space=sflag, size = 0x8, scoped, tag = 'scoped memory for linear_module.1']
    %8 = vsyncpa [#allocation4], 0
    %s9 = scalar_lea.sflag [#allocation4], 1
    %10 = vsyncpa %s9, 0
    loop: start=0, step=1, limit=4
    $region2: #{linear_module.1} parent=1 // loop_pre_header
      _
    $region3: #{linear_module.1} parent=1 // loop_header
      %s12 = sphi 0, %s16
      %p13 = scmp.ge.s32.totalorder %s12, 4
      %s19 = sphi 0, %s38
      %s20 = sphi 0, %s34
      %s21 = sphi 0, %s30
      %s22 = sphi 0, %s19
      %s23 = sphi 0, %s20
      %s24 = sphi 0, %s21
      %s25 = sphi 0, %s22
      %s26 = sphi 0, %s23
      %s27 = sphi 0, %s24
      %s43 = sphi 0, %s45
      %s46 = sphi 0, %s43
      %s47 = sphi 0, %s46
      %s63 = sphi 0, %s47
      %s71 = sphi 0, %s73
      %s74 = sphi 0, %s71
      %s75 = sphi 0, %s74
      %s91 = sphi 0, %s75
      %s97 = sphi 0, %s99
      %s100 = sphi 0, %s97
      %s101 = sphi 0, %s100
      %s117 = sphi 0, %s101
      %s125 = sphi 0, %s127
      %s128 = sphi 0, %s125
      %s129 = sphi 0, %s128
      %s145 = sphi 0, %s129
    $region4: #{linear_module.1} parent=1 // loop_header_branch
      %15 = sbr.rel (%p13) target = $region8
    $region5: #{linear_module.1} parent=1 // loop_body
      %s17 = ssub.s32 %s12, 1
      %s18 = ssub.s32 %s12, 2
      %s28 = sadd.s32 1, %s21
      %p29 = scmp.ge.s32.totalorder %s28, 1
      %s30 = scalar_select %p29, 0, %s28
      %s31 = sadd.s32 1, %s20
      %s32 = scalar_select %p29, %s31, %s20
      %p33 = scmp.ge.s32.totalorder %s32, 2
      %s34 = scalar_select %p33, 0, %s32
      %s35 = sadd.s32 1, %s19
      %s36 = scalar_select %p33, %s35, %s19
      %p37 = scmp.ge.s32.totalorder %s36, 1
      %s38 = scalar_select %p37, 0, %s36
      %s39 = ssub.s32 %s19, %s38
      %s40 = ssub.s32 %s21, %s30
      %s41 = sor.u32 %s39, %s40
      %p42 = scmp.eq.s32.totalorder %s41, 0
      %s44 = sadd.s32 %s43, 1
      %s45 = scalar_select %p42, %s43, %s44
      %p48 = pneg %p42
      %p49 = scmp.eq.s32.totalorder %s12, 1
      %p50 = por %p48, %p49
      %p51 = scmp.ne.s32.totalorder %s43, %s46
      %p52 = scmp.eq.s32.totalorder %s12, 0
      %p53 = por %p51, %p52
      %p54 = scmp.ne.s32.totalorder %s43, %s46
      %p55 = scmp.eq.s32.totalorder %s17, 1
      %p56 = por %p54, %p55
      %p57 = scmp.ne.s32.totalorder %s46, %s47
      %p58 = scmp.eq.s32.totalorder %s17, 0
      %p59 = por %p57, %p58
      %p60 = scmp.ne.s32.totalorder %s46, %s47
      %p61 = scmp.eq.s32.totalorder %s18, 1
      %p62 = por %p60, %p61
      %p64 = scmp.ne.s32.totalorder %s47, %s63
      %p65 = scmp.eq.s32.totalorder %s18, 0
      %p66 = por %p64, %p65
      %s67 = ssub.s32 %s21, %s30
      %s68 = ssub.s32 %s20, %s34
      %s69 = sor.u32 %s67, %s68
      %p70 = scmp.eq.s32.totalorder %s69, 0
      %s72 = sadd.s32 %s71, 1
      %s73 = scalar_select %p70, %s71, %s72
      %p76 = pneg %p70
      %p77 = scmp.eq.s32.totalorder %s12, 1
      %p78 = por %p76, %p77
      %p79 = scmp.ne.s32.totalorder %s71, %s74
      %p80 = scmp.eq.s32.totalorder %s12, 0
      %p81 = por %p79, %p80
      %p82 = scmp.ne.s32.totalorder %s71, %s74
      %p83 = scmp.eq.s32.totalorder %s17, 1
      %p84 = por %p82, %p83
      %p85 = scmp.ne.s32.totalorder %s74, %s75
      %p86 = scmp.eq.s32.totalorder %s17, 0
      %p87 = por %p85, %p86
      %p88 = scmp.ne.s32.totalorder %s74, %s75
      %p89 = scmp.eq.s32.totalorder %s18, 1
      %p90 = por %p88, %p89
      %p92 = scmp.ne.s32.totalorder %s75, %s91
      %p93 = scmp.eq.s32.totalorder %s18, 0
      %p94 = por %p92, %p93
      %s95 = ssub.s32 %s20, %s34
      %p96 = scmp.eq.s32.totalorder %s95, 0
      %s98 = sadd.s32 %s97, 1
      %s99 = scalar_select %p96, %s97, %s98
      %p102 = pneg %p96
      %p103 = scmp.eq.s32.totalorder %s12, 1
      %p104 = por %p102, %p103
      %p105 = scmp.ne.s32.totalorder %s97, %s100
      %p106 = scmp.eq.s32.totalorder %s12, 0
      %p107 = por %p105, %p106
      %p108 = scmp.ne.s32.totalorder %s97, %s100
      %p109 = scmp.eq.s32.totalorder %s17, 1
      %p110 = por %p108, %p109
      %p111 = scmp.ne.s32.totalorder %s100, %s101
      %p112 = scmp.eq.s32.totalorder %s17, 0
      %p113 = por %p111, %p112
      %p114 = scmp.ne.s32.totalorder %s100, %s101
      %p115 = scmp.eq.s32.totalorder %s18, 1
      %p116 = por %p114, %p115
      %p118 = scmp.ne.s32.totalorder %s101, %s117
      %p119 = scmp.eq.s32.totalorder %s18, 0
      %p120 = por %p118, %p119
      %s121 = ssub.s32 %s19, %s38
      %s122 = ssub.s32 %s20, %s34
      %s123 = sor.u32 %s121, %s122
      %p124 = scmp.eq.s32.totalorder %s123, 0
      %s126 = sadd.s32 %s125, 1
      %s127 = scalar_select %p124, %s125, %s126
      %p130 = pneg %p124
      %p131 = scmp.eq.s32.totalorder %s12, 1
      %p132 = por %p130, %p131
      %p133 = scmp.ne.s32.totalorder %s125, %s128
      %p134 = scmp.eq.s32.totalorder %s12, 0
      %p135 = por %p133, %p134
      %p136 = scmp.ne.s32.totalorder %s125, %s128
      %p137 = scmp.eq.s32.totalorder %s17, 1
      %p138 = por %p136, %p137
      %p139 = scmp.ne.s32.totalorder %s128, %s129
      %p140 = scmp.eq.s32.totalorder %s17, 0
      %p141 = por %p139, %p140
      %p142 = scmp.ne.s32.totalorder %s128, %s129
      %p143 = scmp.eq.s32.totalorder %s18, 1
      %p144 = por %p142, %p143
      %p146 = scmp.ne.s32.totalorder %s129, %s145
      %p147 = scmp.eq.s32.totalorder %s18, 0
      %p148 = por %p146, %p147
      %p149 = scmp.le.s32.totalorder 1, %s12
      %p150 = scmp.lt.s32.totalorder %s12, 3
      %p151 = pnand %p149, %p150
      %p152 = pneg %p151
      // Predicated region
      $region9: #{linear_module.1} parent=5 // pred_check
        _
      $region10: #{linear_module.1} parent=5 // pred_check_branch
        %154 = sbr.rel (%p151) target = $region12
      $region11: #{linear_module.1} parent=5 // pred_region
        %s155 = ssub.s32 %s12, 1
        // Predicated region
        $region13: #{linear_module.1} parent=11 // pred_check
          %p156 = pneg %p59
        $region14: #{linear_module.1} parent=11 // pred_check_branch
          %158 = sbr.rel (%p156) target = $region16
        $region15: #{linear_module.1} parent=11 // pred_region
          %s159 = smul.u32 32, %s22
          %s160 = smul.u32 4, %s24
          %p161 = scmp.lt.s32.totalorder %s159, 31
          %s162 = scalar_select %p161, %s159, 31
          %p163 = scmp.lt.s32.totalorder %s160, 3
          %s164 = scalar_select %p163, %s160, 3
          %s165 = smul.addr %s162, 4
          %s166 = sadd.s32 %s164, %s165
          %s167 = smul.addr %s166, 4
          %s168 = scalar_lea.vmem %s0, %s167
          %s169 = smul.u32 32, %s22
          %s170 = smul.u32 4, %s24
        $region16: #{linear_module.1} parent=11 // pred_fallthru
          _
      $region12: #{linear_module.1} parent=5 // pred_fallthru
        _
      %p171 = scmp.lt.s32.totalorder %s12, 2
      // Predicated region
      $region17: #{linear_module.1} parent=5 // pred_check
        %p172 = pneg %p171
      $region18: #{linear_module.1} parent=5 // pred_check_branch
        %174 = sbr.rel (%p172) target = $region20
      $region19: #{linear_module.1} parent=5 // pred_region
        // Predicated region
        $region21: #{linear_module.1} parent=19 // pred_check
          %p175 = pneg %p81
        $region22: #{linear_module.1} parent=19 // pred_check_branch
          %177 = sbr.rel (%p175) target = $region24
        $region23: #{linear_module.1} parent=19 // pred_region
          %s178 = sand.u32 %s71, 1
          %s179 = sand.u32 %s71, 1
          %s180 = smul.addr %s179, 256
          %s181 = scalar_lea.vmem [#allocation2], %s180
          %s182 = smul.u32 64, %s21
          %s183 = smul.addr %s182, 2
          %s184 = sadd.s32 %s20, %s183
          %s185 = smul.addr %s184, 4
          %s186 = scalar_lea.vmem %s1, %s185
          // Predicated region
          $region25: #{linear_module.1} parent=23 // pred_check
            _
          $region26: #{linear_module.1} parent=23 // pred_check_branch
            %188 = sbr.rel (0) target = $region28
          $region27: #{linear_module.1} parent=23 // pred_region
            // Predicated region
            $region29: #{linear_module.1} parent=27 // pred_check
              _
            $region30: #{linear_module.1} parent=27 // pred_check_branch
              %190 = sbr.rel target = $region32
            $region31: #{linear_module.1} parent=27 // pred_region
              // Predicated region
              $region44: #{linear_module.1} parent=31 // pred_check
                _
              $region45: #{linear_module.1} parent=31 // pred_check_branch
                %332 = sbr.rel (0) target = $region47
              $region46: #{linear_module.1} parent=31 // pred_region
                loop: start=0, step=1, limit=1
                $region48: #{linear_module.1} parent=46 // loop_pre_header
                  _
                $region49: #{linear_module.1} parent=46 // loop_header
                  %s334 = sphi 0, %s338
                  %p335 = scmp.ge.s32.totalorder %s334, 1
                  %s339 = sphi %s186, %s186
                  %s340 = sphi %s181, %s181
                $region50: #{linear_module.1} parent=46 // loop_header_branch
                  %337 = sbr.rel (%p335) target = $region54
                $region51: #{linear_module.1} parent=46 // loop_body
                  _
                $region52: #{linear_module.1} parent=46 // loop_footer
                  %s338 = sadd.s32 1, %s334
                $region53: #{linear_module.1} parent=46 // loop_footer_branch
                  %333 = sbr.rel target = $region49
                $region54: #{linear_module.1} parent=46 // loop_exit
                  _
                %s342 = ssub.s32 16, 1
                loop: start=0, step=1, limit=1
                $region55: #{linear_module.1} parent=46 // loop_pre_header
                  _
                $region56: #{linear_module.1} parent=46 // loop_header
                  %s344 = sphi 0, %s348
                  %p345 = scmp.ge.s32.totalorder %s344, 1
                  %s349 = sphi %s186, %s186
                  %s350 = sphi %s181, %s181
                $region57: #{linear_module.1} parent=46 // loop_header_branch
                  %347 = sbr.rel (%p345) target = $region61
                $region58: #{linear_module.1} parent=46 // loop_body
                  %v351 = vld [vmem:[%s349] sm:%s342]
                  %352 = vst [vmem:[%s350] sm:%s342] %v351
                  %v353 = vld [vmem:[%s349 + $0x8] sm:%s342]
                  %354 = vst [vmem:[%s350 + $0x4] sm:%s342] %v353
                  %v355 = vld [vmem:[%s349 + $0x10] sm:%s342]
                  %356 = vst [vmem:[%s350 + $0x8] sm:%s342] %v355
                  %v357 = vld [vmem:[%s349 + $0x18] sm:%s342]
                  %358 = vst [vmem:[%s350 + $0xc] sm:%s342] %v357
                  %v359 = vld [vmem:[%s349 + $0x20] sm:%s342]
                  %360 = vst [vmem:[%s350 + $0x10] sm:%s342] %v359
                  %v361 = vld [vmem:[%s349 + $0x28] sm:%s342]
                  %362 = vst [vmem:[%s350 + $0x14] sm:%s342] %v361
                  %v363 = vld [vmem:[%s349 + $0x30] sm:%s342]
                  %364 = vst [vmem:[%s350 + $0x18] sm:%s342] %v363
                  %v365 = vld [vmem:[%s349 + $0x38] sm:%s342]
                  %366 = vst [vmem:[%s350 + $0x1c] sm:%s342] %v365
                  %v367 = vld [vmem:[%s349 + $0x40] sm:%s342]
                  %368 = vst [vmem:[%s350 + $0x20] sm:%s342] %v367
                  %v369 = vld [vmem:[%s349 + $0x48] sm:%s342]
                  %370 = vst [vmem:[%s350 + $0x24] sm:%s342] %v369
                  %v371 = vld [vmem:[%s349 + $0x50] sm:%s342]
                  %372 = vst [vmem:[%s350 + $0x28] sm:%s342] %v371
                  %v373 = vld [vmem:[%s349 + $0x58] sm:%s342]
                  %374 = vst [vmem:[%s350 + $0x2c] sm:%s342] %v373
                  %v375 = vld [vmem:[%s349 + $0x60] sm:%s342]
                  %376 = vst [vmem:[%s350 + $0x30] sm:%s342] %v375
                  %v377 = vld [vmem:[%s349 + $0x68] sm:%s342]
                  %378 = vst [vmem:[%s350 + $0x34] sm:%s342] %v377
                  %v379 = vld [vmem:[%s349 + $0x70] sm:%s342]
                  %380 = vst [vmem:[%s350 + $0x38] sm:%s342] %v379
                  %v381 = vld [vmem:[%s349 + $0x78] sm:%s342]
                  %382 = vst [vmem:[%s350 + $0x3c] sm:%s342] %v381
                  %v383 = vld [vmem:[%s349 + $0x80] sm:%s342]
                  %384 = vst [vmem:[%s350 + $0x40] sm:%s342] %v383
                  %v385 = vld [vmem:[%s349 + $0x88] sm:%s342]
                  %386 = vst [vmem:[%s350 + $0x44] sm:%s342] %v385
                  %v387 = vld [vmem:[%s349 + $0x90] sm:%s342]
                  %388 = vst [vmem:[%s350 + $0x48] sm:%s342] %v387
                  %v389 = vld [vmem:[%s349 + $0x98] sm:%s342]
                  %390 = vst [vmem:[%s350 + $0x4c] sm:%s342] %v389
                  %v391 = vld [vmem:[%s349 + $0xa0] sm:%s342]
                  %392 = vst [vmem:[%s350 + $0x50] sm:%s342] %v391
                  %v393 = vld [vmem:[%s349 + $0xa8] sm:%s342]
                  %394 = vst [vmem:[%s350 + $0x54] sm:%s342] %v393
                  %v395 = vld [vmem:[%s349 + $0xb0] sm:%s342]
                  %396 = vst [vmem:[%s350 + $0x58] sm:%s342] %v395
                  %v397 = vld [vmem:[%s349 + $0xb8] sm:%s342]
                  %398 = vst [vmem:[%s350 + $0x5c] sm:%s342] %v397
                  %v399 = vld [vmem:[%s349 + $0xc0] sm:%s342]
                  %400 = vst [vmem:[%s350 + $0x60] sm:%s342] %v399
                  %v401 = vld [vmem:[%s349 + $0xc8] sm:%s342]
                  %402 = vst [vmem:[%s350 + $0x64] sm:%s342] %v401
                  %v403 = vld [vmem:[%s349 + $0xd0] sm:%s342]
                  %404 = vst [vmem:[%s350 + $0x68] sm:%s342] %v403
                  %v405 = vld [vmem:[%s349 + $0xd8] sm:%s342]
                  %406 = vst [vmem:[%s350 + $0x6c] sm:%s342] %v405
                  %v407 = vld [vmem:[%s349 + $0xe0] sm:%s342]
                  %408 = vst [vmem:[%s350 + $0x70] sm:%s342] %v407
                  %v409 = vld [vmem:[%s349 + $0xe8] sm:%s342]
                  %410 = vst [vmem:[%s350 + $0x74] sm:%s342] %v409
                  %v411 = vld [vmem:[%s349 + $0xf0] sm:%s342]
                  %412 = vst [vmem:[%s350 + $0x78] sm:%s342] %v411
                  %v413 = vld [vmem:[%s349 + $0xf8] sm:%s342]
                  %414 = vst [vmem:[%s350 + $0x7c] sm:%s342] %v413
                  %v415 = vld [vmem:[%s349 + $0x100] sm:%s342]
                  %416 = vst [vmem:[%s350 + $0x80] sm:%s342] %v415
                  %v417 = vld [vmem:[%s349 + $0x108] sm:%s342]
                  %418 = vst [vmem:[%s350 + $0x84] sm:%s342] %v417
                  %v419 = vld [vmem:[%s349 + $0x110] sm:%s342]
                  %420 = vst [vmem:[%s350 + $0x88] sm:%s342] %v419
                  %v421 = vld [vmem:[%s349 + $0x118] sm:%s342]
                  %422 = vst [vmem:[%s350 + $0x8c] sm:%s342] %v421
                  %v423 = vld [vmem:[%s349 + $0x120] sm:%s342]
                  %424 = vst [vmem:[%s350 + $0x90] sm:%s342] %v423
                  %v425 = vld [vmem:[%s349 + $0x128] sm:%s342]
                  %426 = vst [vmem:[%s350 + $0x94] sm:%s342] %v425
                  %v427 = vld [vmem:[%s349 + $0x130] sm:%s342]
                  %428 = vst [vmem:[%s350 + $0x98] sm:%s342] %v427
                  %v429 = vld [vmem:[%s349 + $0x138] sm:%s342]
                  %430 = vst [vmem:[%s350 + $0x9c] sm:%s342] %v429
                  %v431 = vld [vmem:[%s349 + $0x140] sm:%s342]
                  %432 = vst [vmem:[%s350 + $0xa0] sm:%s342] %v431
                  %v433 = vld [vmem:[%s349 + $0x148] sm:%s342]
                  %434 = vst [vmem:[%s350 + $0xa4] sm:%s342] %v433
                  %v435 = vld [vmem:[%s349 + $0x150] sm:%s342]
                  %436 = vst [vmem:[%s350 + $0xa8] sm:%s342] %v435
                  %v437 = vld [vmem:[%s349 + $0x158] sm:%s342]
                  %438 = vst [vmem:[%s350 + $0xac] sm:%s342] %v437
                  %v439 = vld [vmem:[%s349 + $0x160] sm:%s342]
                  %440 = vst [vmem:[%s350 + $0xb0] sm:%s342] %v439
                  %v441 = vld [vmem:[%s349 + $0x168] sm:%s342]
                  %442 = vst [vmem:[%s350 + $0xb4] sm:%s342] %v441
                  %v443 = vld [vmem:[%s349 + $0x170] sm:%s342]
                  %444 = vst [vmem:[%s350 + $0xb8] sm:%s342] %v443
                  %v445 = vld [vmem:[%s349 + $0x178] sm:%s342]
                  %446 = vst [vmem:[%s350 + $0xbc] sm:%s342] %v445
                  %v447 = vld [vmem:[%s349 + $0x180] sm:%s342]
                  %448 = vst [vmem:[%s350 + $0xc0] sm:%s342] %v447
                  %v449 = vld [vmem:[%s349 + $0x188] sm:%s342]
                  %450 = vst [vmem:[%s350 + $0xc4] sm:%s342] %v449
                  %v451 = vld [vmem:[%s349 + $0x190] sm:%s342]
                  %452 = vst [vmem:[%s350 + $0xc8] sm:%s342] %v451
                  %v453 = vld [vmem:[%s349 + $0x198] sm:%s342]
                  %454 = vst [vmem:[%s350 + $0xcc] sm:%s342] %v453
                  %v455 = vld [vmem:[%s349 + $0x1a0] sm:%s342]
                  %456 = vst [vmem:[%s350 + $0xd0] sm:%s342] %v455
                  %v457 = vld [vmem:[%s349 + $0x1a8] sm:%s342]
                  %458 = vst [vmem:[%s350 + $0xd4] sm:%s342] %v457
                  %v459 = vld [vmem:[%s349 + $0x1b0] sm:%s342]
                  %460 = vst [vmem:[%s350 + $0xd8] sm:%s342] %v459
                  %v461 = vld [vmem:[%s349 + $0x1b8] sm:%s342]
                  %462 = vst [vmem:[%s350 + $0xdc] sm:%s342] %v461
                  %v463 = vld [vmem:[%s349 + $0x1c0] sm:%s342]
                  %464 = vst [vmem:[%s350 + $0xe0] sm:%s342] %v463
                  %v465 = vld [vmem:[%s349 + $0x1c8] sm:%s342]
                  %466 = vst [vmem:[%s350 + $0xe4] sm:%s342] %v465
                  %v467 = vld [vmem:[%s349 + $0x1d0] sm:%s342]
                  %468 = vst [vmem:[%s350 + $0xe8] sm:%s342] %v467
                  %v469 = vld [vmem:[%s349 + $0x1d8] sm:%s342]
                  %470 = vst [vmem:[%s350 + $0xec] sm:%s342] %v469
                  %v471 = vld [vmem:[%s349 + $0x1e0] sm:%s342]
                  %472 = vst [vmem:[%s350 + $0xf0] sm:%s342] %v471
                  %v473 = vld [vmem:[%s349 + $0x1e8] sm:%s342]
                  %474 = vst [vmem:[%s350 + $0xf4] sm:%s342] %v473
                  %v475 = vld [vmem:[%s349 + $0x1f0] sm:%s342]
                  %476 = vst [vmem:[%s350 + $0xf8] sm:%s342] %v475
                  %v477 = vld [vmem:[%s349 + $0x1f8] sm:%s342]
                  %478 = vst [vmem:[%s350 + $0xfc] sm:%s342] %v477
                $region59: #{linear_module.1} parent=46 // loop_footer
                  %s348 = sadd.s32 1, %s344
                $region60: #{linear_module.1} parent=46 // loop_footer_branch
                  %343 = sbr.rel target = $region56
                $region61: #{linear_module.1} parent=46 // loop_exit
                  _
              $region47: #{linear_module.1} parent=31 // pred_fallthru
                _
            $region32: #{linear_module.1} parent=27 // pred_fallthru
              _
            // Predicated region
            $region33: #{linear_module.1} parent=27 // pred_check
              _
            $region34: #{linear_module.1} parent=27 // pred_check_branch
              %192 = sbr.rel (0) target = $region36
            $region35: #{linear_module.1} parent=27 // pred_region
              %s194 = ssub.s32 16, 1
              loop: start=0, step=1, limit=1
              $region37: #{linear_module.1} parent=35 // loop_pre_header
                _
              $region38: #{linear_module.1} parent=35 // loop_header
                %s196 = sphi 0, %s200
                %p197 = scmp.ge.s32.totalorder %s196, 1
                %s201 = sphi %s186, %s186
                %s202 = sphi %s181, %s181
              $region39: #{linear_module.1} parent=35 // loop_header_branch
                %199 = sbr.rel (%p197) target = $region43
              $region40: #{linear_module.1} parent=35 // loop_body
                %v203 = vld [vmem:[%s201] sm:%s194]
                %204 = vst [vmem:[%s202] sm:%s194] %v203
                %v205 = vld [vmem:[%s201 + $0x8] sm:%s194]
                %206 = vst [vmem:[%s202 + $0x4] sm:%s194] %v205
                %v207 = vld [vmem:[%s201 + $0x10] sm:%s194]
                %208 = vst [vmem:[%s202 + $0x8] sm:%s194] %v207
                %v209 = vld [vmem:[%s201 + $0x18] sm:%s194]
                %210 = vst [vmem:[%s202 + $0xc] sm:%s194] %v209
                %v211 = vld [vmem:[%s201 + $0x20] sm:%s194]
                %212 = vst [vmem:[%s202 + $0x10] sm:%s194] %v211
                %v213 = vld [vmem:[%s201 + $0x28] sm:%s194]
                %214 = vst [vmem:[%s202 + $0x14] sm:%s194] %v213
                %v215 = vld [vmem:[%s201 + $0x30] sm:%s194]
                %216 = vst [vmem:[%s202 + $0x18] sm:%s194] %v215
                %v217 = vld [vmem:[%s201 + $0x38] sm:%s194]
                %218 = vst [vmem:[%s202 + $0x1c] sm:%s194] %v217
                %v219 = vld [vmem:[%s201 + $0x40] sm:%s194]
                %220 = vst [vmem:[%s202 + $0x20] sm:%s194] %v219
                %v221 = vld [vmem:[%s201 + $0x48] sm:%s194]
                %222 = vst [vmem:[%s202 + $0x24] sm:%s194] %v221
                %v223 = vld [vmem:[%s201 + $0x50] sm:%s194]
                %224 = vst [vmem:[%s202 + $0x28] sm:%s194] %v223
                %v225 = vld [vmem:[%s201 + $0x58] sm:%s194]
                %226 = vst [vmem:[%s202 + $0x2c] sm:%s194] %v225
                %v227 = vld [vmem:[%s201 + $0x60] sm:%s194]
                %228 = vst [vmem:[%s202 + $0x30] sm:%s194] %v227
                %v229 = vld [vmem:[%s201 + $0x68] sm:%s194]
                %230 = vst [vmem:[%s202 + $0x34] sm:%s194] %v229
                %v231 = vld [vmem:[%s201 + $0x70] sm:%s194]
                %232 = vst [vmem:[%s202 + $0x38] sm:%s194] %v231
                %v233 = vld [vmem:[%s201 + $0x78] sm:%s194]
                %234 = vst [vmem:[%s202 + $0x3c] sm:%s194] %v233
                %v235 = vld [vmem:[%s201 + $0x80] sm:%s194]
                %236 = vst [vmem:[%s202 + $0x40] sm:%s194] %v235
                %v237 = vld [vmem:[%s201 + $0x88] sm:%s194]
                %238 = vst [vmem:[%s202 + $0x44] sm:%s194] %v237
                %v239 = vld [vmem:[%s201 + $0x90] sm:%s194]
                %240 = vst [vmem:[%s202 + $0x48] sm:%s194] %v239
                %v241 = vld [vmem:[%s201 + $0x98] sm:%s194]
                %242 = vst [vmem:[%s202 + $0x4c] sm:%s194] %v241
                %v243 = vld [vmem:[%s201 + $0xa0] sm:%s194]
                %244 = vst [vmem:[%s202 + $0x50] sm:%s194] %v243
                %v245 = vld [vmem:[%s201 + $0xa8] sm:%s194]
                %246 = vst [vmem:[%s202 + $0x54] sm:%s194] %v245
                %v247 = vld [vmem:[%s201 + $0xb0] sm:%s194]
                %248 = vst [vmem:[%s202 + $0x58] sm:%s194] %v247
                %v249 = vld [vmem:[%s201 + $0xb8] sm:%s194]
                %250 = vst [vmem:[%s202 + $0x5c] sm:%s194] %v249
                %v251 = vld [vmem:[%s201 + $0xc0] sm:%s194]
                %252 = vst [vmem:[%s202 + $0x60] sm:%s194] %v251
                %v253 = vld [vmem:[%s201 + $0xc8] sm:%s194]
                %254 = vst [vmem:[%s202 + $0x64] sm:%s194] %v253
                %v255 = vld [vmem:[%s201 + $0xd0] sm:%s194]
                %256 = vst [vmem:[%s202 + $0x68] sm:%s194] %v255
                %v257 = vld [vmem:[%s201 + $0xd8] sm:%s194]
                %258 = vst [vmem:[%s202 + $0x6c] sm:%s194] %v257
                %v259 = vld [vmem:[%s201 + $0xe0] sm:%s194]
                %260 = vst [vmem:[%s202 + $0x70] sm:%s194] %v259
                %v261 = vld [vmem:[%s201 + $0xe8] sm:%s194]
                %262 = vst [vmem:[%s202 + $0x74] sm:%s194] %v261
                %v263 = vld [vmem:[%s201 + $0xf0] sm:%s194]
                %264 = vst [vmem:[%s202 + $0x78] sm:%s194] %v263
                %v265 = vld [vmem:[%s201 + $0xf8] sm:%s194]
                %266 = vst [vmem:[%s202 + $0x7c] sm:%s194] %v265
                %v267 = vld [vmem:[%s201 + $0x100] sm:%s194]
                %268 = vst [vmem:[%s202 + $0x80] sm:%s194] %v267
                %v269 = vld [vmem:[%s201 + $0x108] sm:%s194]
                %270 = vst [vmem:[%s202 + $0x84] sm:%s194] %v269
                %v271 = vld [vmem:[%s201 + $0x110] sm:%s194]
                %272 = vst [vmem:[%s202 + $0x88] sm:%s194] %v271
                %v273 = vld [vmem:[%s201 + $0x118] sm:%s194]
                %274 = vst [vmem:[%s202 + $0x8c] sm:%s194] %v273
                %v275 = vld [vmem:[%s201 + $0x120] sm:%s194]
                %276 = vst [vmem:[%s202 + $0x90] sm:%s194] %v275
                %v277 = vld [vmem:[%s201 + $0x128] sm:%s194]
                %278 = vst [vmem:[%s202 + $0x94] sm:%s194] %v277
                %v279 = vld [vmem:[%s201 + $0x130] sm:%s194]
                %280 = vst [vmem:[%s202 + $0x98] sm:%s194] %v279
                %v281 = vld [vmem:[%s201 + $0x138] sm:%s194]
                %282 = vst [vmem:[%s202 + $0x9c] sm:%s194] %v281
                %v283 = vld [vmem:[%s201 + $0x140] sm:%s194]
                %284 = vst [vmem:[%s202 + $0xa0] sm:%s194] %v283
                %v285 = vld [vmem:[%s201 + $0x148] sm:%s194]
                %286 = vst [vmem:[%s202 + $0xa4] sm:%s194] %v285
                %v287 = vld [vmem:[%s201 + $0x150] sm:%s194]
                %288 = vst [vmem:[%s202 + $0xa8] sm:%s194] %v287
                %v289 = vld [vmem:[%s201 + $0x158] sm:%s194]
                %290 = vst [vmem:[%s202 + $0xac] sm:%s194] %v289
                %v291 = vld [vmem:[%s201 + $0x160] sm:%s194]
                %292 = vst [vmem:[%s202 + $0xb0] sm:%s194] %v291
                %v293 = vld [vmem:[%s201 + $0x168] sm:%s194]
                %294 = vst [vmem:[%s202 + $0xb4] sm:%s194] %v293
                %v295 = vld [vmem:[%s201 + $0x170] sm:%s194]
                %296 = vst [vmem:[%s202 + $0xb8] sm:%s194] %v295
                %v297 = vld [vmem:[%s201 + $0x178] sm:%s194]
                %298 = vst [vmem:[%s202 + $0xbc] sm:%s194] %v297
                %v299 = vld [vmem:[%s201 + $0x180] sm:%s194]
                %300 = vst [vmem:[%s202 + $0xc0] sm:%s194] %v299
                %v301 = vld [vmem:[%s201 + $0x188] sm:%s194]
                %302 = vst [vmem:[%s202 + $0xc4] sm:%s194] %v301
                %v303 = vld [vmem:[%s201 + $0x190] sm:%s194]
                %304 = vst [vmem:[%s202 + $0xc8] sm:%s194] %v303
                %v305 = vld [vmem:[%s201 + $0x198] sm:%s194]
                %306 = vst [vmem:[%s202 + $0xcc] sm:%s194] %v305
                %v307 = vld [vmem:[%s201 + $0x1a0] sm:%s194]
                %308 = vst [vmem:[%s202 + $0xd0] sm:%s194] %v307
                %v309 = vld [vmem:[%s201 + $0x1a8] sm:%s194]
                %310 = vst [vmem:[%s202 + $0xd4] sm:%s194] %v309
                %v311 = vld [vmem:[%s201 + $0x1b0] sm:%s194]
                %312 = vst [vmem:[%s202 + $0xd8] sm:%s194] %v311
                %v313 = vld [vmem:[%s201 + $0x1b8] sm:%s194]
                %314 = vst [vmem:[%s202 + $0xdc] sm:%s194] %v313
                %v315 = vld [vmem:[%s201 + $0x1c0] sm:%s194]
                %316 = vst [vmem:[%s202 + $0xe0] sm:%s194] %v315
                %v317 = vld [vmem:[%s201 + $0x1c8] sm:%s194]
                %318 = vst [vmem:[%s202 + $0xe4] sm:%s194] %v317
                %v319 = vld [vmem:[%s201 + $0x1d0] sm:%s194]
                %320 = vst [vmem:[%s202 + $0xe8] sm:%s194] %v319
                %v321 = vld [vmem:[%s201 + $0x1d8] sm:%s194]
                %322 = vst [vmem:[%s202 + $0xec] sm:%s194] %v321
                %v323 = vld [vmem:[%s201 + $0x1e0] sm:%s194]
                %324 = vst [vmem:[%s202 + $0xf0] sm:%s194] %v323
                %v325 = vld [vmem:[%s201 + $0x1e8] sm:%s194]
                %326 = vst [vmem:[%s202 + $0xf4] sm:%s194] %v325
                %v327 = vld [vmem:[%s201 + $0x1f0] sm:%s194]
                %328 = vst [vmem:[%s202 + $0xf8] sm:%s194] %v327
                %v329 = vld [vmem:[%s201 + $0x1f8] sm:%s194]
                %330 = vst [vmem:[%s202 + $0xfc] sm:%s194] %v329
              $region41: #{linear_module.1} parent=35 // loop_footer
                %s200 = sadd.s32 1, %s196
              $region42: #{linear_module.1} parent=35 // loop_footer_branch
                %195 = sbr.rel target = $region38
              $region43: #{linear_module.1} parent=35 // loop_exit
                _
            $region36: #{linear_module.1} parent=27 // pred_fallthru
              _
          $region28: #{linear_module.1} parent=23 // pred_fallthru
            _
          %479 = vnop
        $region24: #{linear_module.1} parent=19 // pred_fallthru
          _
        // Predicated region
        $region62: #{linear_module.1} parent=19 // pred_check
          %p480 = pneg %p107
        $region63: #{linear_module.1} parent=19 // pred_check_branch
          %482 = sbr.rel (%p480) target = $region65
        $region64: #{linear_module.1} parent=19 // pred_region
          %p483 = scmp.lt.s32.totalorder %s20, 1
          %s484 = scalar_select %p483, %s20, 1
          %s485 = scalar_lea.vmem %s2, %s484
        $region65: #{linear_module.1} parent=19 // pred_fallthru
          _
      $region20: #{linear_module.1} parent=5 // pred_fallthru
        _
      %p486 = scmp.le.s32.totalorder 1, %s12
      %p487 = scmp.lt.s32.totalorder %s12, 3
      %p488 = pnand %p486, %p487
      %p489 = pneg %p488
      // Predicated region
      $region66: #{linear_module.1} parent=5 // pred_check
        _
      $region67: #{linear_module.1} parent=5 // pred_check_branch
        %491 = sbr.rel (%p488) target = $region69
      $region68: #{linear_module.1} parent=5 // pred_region
        %s492 = ssub.s32 %s12, 1
        %s493 = sand.u32 %s74, 1
        %s494 = sand.u32 %s74, 1
        %s495 = smul.addr %s494, 256
        %s496 = scalar_lea.vmem [#allocation2], %s495
        // Predicated region
        $region70: #{linear_module.1} parent=68 // pred_check
          %p497 = pneg %p87
        $region71: #{linear_module.1} parent=68 // pred_check_branch
          %499 = sbr.rel (%p497) target = $region73
        $region72: #{linear_module.1} parent=68 // pred_region
          _
        $region73: #{linear_module.1} parent=68 // pred_fallthru
          _
        %s500 = smul.u32 32, %s22
        %s501 = smul.u32 4, %s24
        %p502 = scmp.lt.s32.totalorder %s500, 31
        %s503 = scalar_select %p502, %s500, 31
        %p504 = scmp.lt.s32.totalorder %s501, 3
        %s505 = scalar_select %p504, %s501, 3
        %s506 = smul.addr %s503, 4
        %s507 = sadd.s32 %s505, %s506
        %s508 = smul.addr %s507, 4
        %s509 = scalar_lea.vmem %s0, %s508
        %p510 = pneg %p59
        %p511 = pneg %p56
        %s512 = sand.u32 %s74, 1
        %s513 = sand.u32 %s74, 1
        %s514 = smul.addr %s513, 256
        %s515 = scalar_lea.vmem [#allocation2], %s514
        %p516 = pneg %p87
        %p517 = pneg %p84
        %p518 = scmp.lt.s32.totalorder %s23, 1
        %s519 = scalar_select %p518, %s23, 1
        %s520 = scalar_lea.vmem %s2, %s519
        %p521 = pneg %p113
        %p522 = pneg %p110
        %p523 = pneg %p141
        %p524 = pneg %p138
        %s525 = sand.u32 %s128, 1
        %s526 = scalar_lea.sflag [#allocation4], %s525
        %s527 = sand.u32 %s128, 1
        %s528 = smul.addr %s527, 256
        %s529 = scalar_lea.vmem [#allocation3], %s528
        %s530 = smul.u32 32, %s22
        %s531 = smul.u32 4, %s24
        %p532 = scmp.lt.s32.totalorder %s530, 31
        %s533 = scalar_select %p532, %s530, 31
        %p534 = scmp.lt.s32.totalorder %s531, 3
        %s535 = scalar_select %p534, %s531, 3
        %s536 = smul.addr %s533, 4
        %s537 = sadd.s32 %s535, %s536
        %s538 = smul.addr %s537, 4
        %s539 = scalar_lea.vmem %s0, %s538
        %s540 = smul.u32 32, %s22
        %s541 = smul.u32 4, %s24
        %s542 = smul.u32 64, %s24
        %p543 = scmp.lt.s32.totalorder %s23, 1
        %s544 = scalar_select %p543, %s23, 1
        %s545 = scalar_lea.vmem %s2, %s544
        %s546 = smul.u32 32, %s22
        %p548 = scmp.eq.s32.totalorder %s24, 0
        // Predicated region
        $region74: #{linear_module.1} parent=68 // pred_check
          %p549 = pneg %p548
        $region75: #{linear_module.1} parent=68 // pred_check_branch
          %551 = sbr.rel (%p549) target = $region77
        $region76: #{linear_module.1} parent=68 // pred_region
          %v552 = vld [vmem:[%s545] sm:$0x1]
          %v554 = vlaneseq
          %v555 = vshrl.u32 %v554, 7
          %v556 = vsub.s32 0, %v555
          %v557 = vrot.slane %v552, %v556
          %559 = vst [vmem:[%s529] sm:$0xff] %v557
          %560 = vst [vmem:[%s529 + $0x8] sm:$0xff] %v557
          %561 = vst [vmem:[%s529 + $0x10] sm:$0xff] %v557
          %562 = vst [vmem:[%s529 + $0x18] sm:$0xff] %v557
          %563 = vst [vmem:[%s529 + $0x20] sm:$0xff] %v557
          %564 = vst [vmem:[%s529 + $0x28] sm:$0xff] %v557
          %565 = vst [vmem:[%s529 + $0x30] sm:$0xff] %v557
          %566 = vst [vmem:[%s529 + $0x38] sm:$0xff] %v557
          %567 = vst [vmem:[%s529 + $0x40] sm:$0xff] %v557
          %568 = vst [vmem:[%s529 + $0x48] sm:$0xff] %v557
          %569 = vst [vmem:[%s529 + $0x50] sm:$0xff] %v557
          %570 = vst [vmem:[%s529 + $0x58] sm:$0xff] %v557
          %571 = vst [vmem:[%s529 + $0x60] sm:$0xff] %v557
          %572 = vst [vmem:[%s529 + $0x68] sm:$0xff] %v557
          %573 = vst [vmem:[%s529 + $0x70] sm:$0xff] %v557
          %574 = vst [vmem:[%s529 + $0x78] sm:$0xff] %v557
          %575 = vst [vmem:[%s529 + $0x80] sm:$0xff] %v557
          %576 = vst [vmem:[%s529 + $0x88] sm:$0xff] %v557
          %577 = vst [vmem:[%s529 + $0x90] sm:$0xff] %v557
          %578 = vst [vmem:[%s529 + $0x98] sm:$0xff] %v557
          %579 = vst [vmem:[%s529 + $0xa0] sm:$0xff] %v557
          %580 = vst [vmem:[%s529 + $0xa8] sm:$0xff] %v557
          %581 = vst [vmem:[%s529 + $0xb0] sm:$0xff] %v557
          %582 = vst [vmem:[%s529 + $0xb8] sm:$0xff] %v557
          %583 = vst [vmem:[%s529 + $0xc0] sm:$0xff] %v557
          %584 = vst [vmem:[%s529 + $0xc8] sm:$0xff] %v557
          %585 = vst [vmem:[%s529 + $0xd0] sm:$0xff] %v557
          %586 = vst [vmem:[%s529 + $0xd8] sm:$0xff] %v557
          %587 = vst [vmem:[%s529 + $0xe0] sm:$0xff] %v557
          %588 = vst [vmem:[%s529 + $0xe8] sm:$0xff] %v557
          %589 = vst [vmem:[%s529 + $0xf0] sm:$0xff] %v557
          %590 = vst [vmem:[%s529 + $0xf8] sm:$0xff] %v557
        $region77: #{linear_module.1} parent=68 // pred_fallthru
          _
        %v591 = vld [vmem:[%s529] sm:$0xff]
        %v592 = vld [vmem:[%s529 + $0x8] sm:$0xff]
        %v593 = vld [vmem:[%s529 + $0x10] sm:$0xff]
        %v594 = vld [vmem:[%s529 + $0x18] sm:$0xff]
        %v595 = vld [vmem:[%s529 + $0x20] sm:$0xff]
        %v596 = vld [vmem:[%s529 + $0x28] sm:$0xff]
        %v597 = vld [vmem:[%s529 + $0x30] sm:$0xff]
        %v598 = vld [vmem:[%s529 + $0x38] sm:$0xff]
        %v599 = vld [vmem:[%s529 + $0x40] sm:$0xff]
        %v600 = vld [vmem:[%s529 + $0x48] sm:$0xff]
        %v601 = vld [vmem:[%s529 + $0x50] sm:$0xff]
        %v602 = vld [vmem:[%s529 + $0x58] sm:$0xff]
        %v603 = vld [vmem:[%s529 + $0x60] sm:$0xff]
        %v604 = vld [vmem:[%s529 + $0x68] sm:$0xff]
        %v605 = vld [vmem:[%s529 + $0x70] sm:$0xff]
        %v606 = vld [vmem:[%s529 + $0x78] sm:$0xff]
        %v607 = vld [vmem:[%s529 + $0x80] sm:$0xff]
        %v608 = vld [vmem:[%s529 + $0x88] sm:$0xff]
        %v609 = vld [vmem:[%s529 + $0x90] sm:$0xff]
        %v610 = vld [vmem:[%s529 + $0x98] sm:$0xff]
        %v611 = vld [vmem:[%s529 + $0xa0] sm:$0xff]
        %v612 = vld [vmem:[%s529 + $0xa8] sm:$0xff]
        %v613 = vld [vmem:[%s529 + $0xb0] sm:$0xff]
        %v614 = vld [vmem:[%s529 + $0xb8] sm:$0xff]
        %v615 = vld [vmem:[%s529 + $0xc0] sm:$0xff]
        %v616 = vld [vmem:[%s529 + $0xc8] sm:$0xff]
        %v617 = vld [vmem:[%s529 + $0xd0] sm:$0xff]
        %v618 = vld [vmem:[%s529 + $0xd8] sm:$0xff]
        %v619 = vld [vmem:[%s529 + $0xe0] sm:$0xff]
        %v620 = vld [vmem:[%s529 + $0xe8] sm:$0xff]
        %v621 = vld [vmem:[%s529 + $0xf0] sm:$0xff]
        %v622 = vld [vmem:[%s529 + $0xf8] sm:$0xff]
        %v623 = vld [vmem:[%s539] sm:$0xff]
        %v624 = vld [vmem:[%s539 + $0x8] sm:$0xff]
        %v625 = vld [vmem:[%s539 + $0x10] sm:$0xff]
        %v626 = vld [vmem:[%s539 + $0x18] sm:$0xff]
        %v627 = vld [vmem:[%s539 + $0x20] sm:$0xff]
        %v628 = vld [vmem:[%s539 + $0x28] sm:$0xff]
        %v629 = vld [vmem:[%s539 + $0x30] sm:$0xff]
        %v630 = vld [vmem:[%s539 + $0x38] sm:$0xff]
        %v631 = vld [vmem:[%s539 + $0x40] sm:$0xff]
        %v632 = vld [vmem:[%s539 + $0x48] sm:$0xff]
        %v633 = vld [vmem:[%s539 + $0x50] sm:$0xff]
        %v634 = vld [vmem:[%s539 + $0x58] sm:$0xff]
        %v635 = vld [vmem:[%s539 + $0x60] sm:$0xff]
        %v636 = vld [vmem:[%s539 + $0x68] sm:$0xff]
        %v637 = vld [vmem:[%s539 + $0x70] sm:$0xff]
        %v638 = vld [vmem:[%s539 + $0x78] sm:$0xff]
        %v639 = vld [vmem:[%s539 + $0x80] sm:$0xff]
        %v640 = vld [vmem:[%s539 + $0x88] sm:$0xff]
        %v641 = vld [vmem:[%s539 + $0x90] sm:$0xff]
        %v642 = vld [vmem:[%s539 + $0x98] sm:$0xff]
        %v643 = vld [vmem:[%s539 + $0xa0] sm:$0xff]
        %v644 = vld [vmem:[%s539 + $0xa8] sm:$0xff]
        %v645 = vld [vmem:[%s539 + $0xb0] sm:$0xff]
        %v646 = vld [vmem:[%s539 + $0xb8] sm:$0xff]
        %v647 = vld [vmem:[%s539 + $0xc0] sm:$0xff]
        %v648 = vld [vmem:[%s539 + $0xc8] sm:$0xff]
        %v649 = vld [vmem:[%s539 + $0xd0] sm:$0xff]
        %v650 = vld [vmem:[%s539 + $0xd8] sm:$0xff]
        %v651 = vld [vmem:[%s539 + $0xe0] sm:$0xff]
        %v652 = vld [vmem:[%s539 + $0xe8] sm:$0xff]
        %v653 = vld [vmem:[%s539 + $0xf0] sm:$0xff]
        %v654 = vld [vmem:[%s539 + $0xf8] sm:$0xff]
        %v655 = vld [vmem:[%s539 + $0x100] sm:$0xff]
        %v656 = vld [vmem:[%s539 + $0x108] sm:$0xff]
        %v657 = vld [vmem:[%s539 + $0x110] sm:$0xff]
        %v658 = vld [vmem:[%s539 + $0x118] sm:$0xff]
        %v659 = vld [vmem:[%s539 + $0x120] sm:$0xff]
        %v660 = vld [vmem:[%s539 + $0x128] sm:$0xff]
        %v661 = vld [vmem:[%s539 + $0x130] sm:$0xff]
        %v662 = vld [vmem:[%s539 + $0x138] sm:$0xff]
        %v663 = vld [vmem:[%s539 + $0x140] sm:$0xff]
        %v664 = vld [vmem:[%s539 + $0x148] sm:$0xff]
        %v665 = vld [vmem:[%s539 + $0x150] sm:$0xff]
        %v666 = vld [vmem:[%s539 + $0x158] sm:$0xff]
        %v667 = vld [vmem:[%s539 + $0x160] sm:$0xff]
        %v668 = vld [vmem:[%s539 + $0x168] sm:$0xff]
        %v669 = vld [vmem:[%s539 + $0x170] sm:$0xff]
        %v670 = vld [vmem:[%s539 + $0x178] sm:$0xff]
        %v671 = vld [vmem:[%s539 + $0x180] sm:$0xff]
        %v672 = vld [vmem:[%s539 + $0x188] sm:$0xff]
        %v673 = vld [vmem:[%s539 + $0x190] sm:$0xff]
        %v674 = vld [vmem:[%s539 + $0x198] sm:$0xff]
        %v675 = vld [vmem:[%s539 + $0x1a0] sm:$0xff]
        %v676 = vld [vmem:[%s539 + $0x1a8] sm:$0xff]
        %v677 = vld [vmem:[%s539 + $0x1b0] sm:$0xff]
        %v678 = vld [vmem:[%s539 + $0x1b8] sm:$0xff]
        %v679 = vld [vmem:[%s539 + $0x1c0] sm:$0xff]
        %v680 = vld [vmem:[%s539 + $0x1c8] sm:$0xff]
        %v681 = vld [vmem:[%s539 + $0x1d0] sm:$0xff]
        %v682 = vld [vmem:[%s539 + $0x1d8] sm:$0xff]
        %v683 = vld [vmem:[%s539 + $0x1e0] sm:$0xff]
        %v684 = vld [vmem:[%s539 + $0x1e8] sm:$0xff]
        %v685 = vld [vmem:[%s539 + $0x1f0] sm:$0xff]
        %v686 = vld [vmem:[%s539 + $0x1f8] sm:$0xff]
        %v687 = vld [vmem:[%s496] sm:$0xf]
        %v688 = vld [vmem:[%s496 + $0x4] sm:$0xf]
        %v689 = vld [vmem:[%s496 + $0x8] sm:$0xf]
        %v690 = vld [vmem:[%s496 + $0xc] sm:$0xf]
        %v691 = vld [vmem:[%s496 + $0x10] sm:$0xf]
        %v692 = vld [vmem:[%s496 + $0x14] sm:$0xf]
        %v693 = vld [vmem:[%s496 + $0x18] sm:$0xf]
        %v694 = vld [vmem:[%s496 + $0x1c] sm:$0xf]
        %v695 = vld [vmem:[%s496 + $0x20] sm:$0xf]
        %v696 = vld [vmem:[%s496 + $0x24] sm:$0xf]
        %v697 = vld [vmem:[%s496 + $0x28] sm:$0xf]
        %v698 = vld [vmem:[%s496 + $0x2c] sm:$0xf]
        %v699 = vld [vmem:[%s496 + $0x30] sm:$0xf]
        %v700 = vld [vmem:[%s496 + $0x34] sm:$0xf]
        %v701 = vld [vmem:[%s496 + $0x38] sm:$0xf]
        %v702 = vld [vmem:[%s496 + $0x3c] sm:$0xf]
        %v703 = vld [vmem:[%s496 + $0x40] sm:$0xf]
        %v704 = vld [vmem:[%s496 + $0x44] sm:$0xf]
        %v705 = vld [vmem:[%s496 + $0x48] sm:$0xf]
        %v706 = vld [vmem:[%s496 + $0x4c] sm:$0xf]
        %v707 = vld [vmem:[%s496 + $0x50] sm:$0xf]
        %v708 = vld [vmem:[%s496 + $0x54] sm:$0xf]
        %v709 = vld [vmem:[%s496 + $0x58] sm:$0xf]
        %v710 = vld [vmem:[%s496 + $0x5c] sm:$0xf]
        %v711 = vld [vmem:[%s496 + $0x60] sm:$0xf]
        %v712 = vld [vmem:[%s496 + $0x64] sm:$0xf]
        %v713 = vld [vmem:[%s496 + $0x68] sm:$0xf]
        %v714 = vld [vmem:[%s496 + $0x6c] sm:$0xf]
        %v715 = vld [vmem:[%s496 + $0x70] sm:$0xf]
        %v716 = vld [vmem:[%s496 + $0x74] sm:$0xf]
        %v717 = vld [vmem:[%s496 + $0x78] sm:$0xf]
        %v718 = vld [vmem:[%s496 + $0x7c] sm:$0xf]
        %v719 = vld [vmem:[%s496 + $0x80] sm:$0xf]
        %v720 = vld [vmem:[%s496 + $0x84] sm:$0xf]
        %v721 = vld [vmem:[%s496 + $0x88] sm:$0xf]
        %v722 = vld [vmem:[%s496 + $0x8c] sm:$0xf]
        %v723 = vld [vmem:[%s496 + $0x90] sm:$0xf]
        %v724 = vld [vmem:[%s496 + $0x94] sm:$0xf]
        %v725 = vld [vmem:[%s496 + $0x98] sm:$0xf]
        %v726 = vld [vmem:[%s496 + $0x9c] sm:$0xf]
        %v727 = vld [vmem:[%s496 + $0xa0] sm:$0xf]
        %v728 = vld [vmem:[%s496 + $0xa4] sm:$0xf]
        %v729 = vld [vmem:[%s496 + $0xa8] sm:$0xf]
        %v730 = vld [vmem:[%s496 + $0xac] sm:$0xf]
        %v731 = vld [vmem:[%s496 + $0xb0] sm:$0xf]
        %v732 = vld [vmem:[%s496 + $0xb4] sm:$0xf]
        %v733 = vld [vmem:[%s496 + $0xb8] sm:$0xf]
        %v734 = vld [vmem:[%s496 + $0xbc] sm:$0xf]
        %v735 = vld [vmem:[%s496 + $0xc0] sm:$0xf]
        %v736 = vld [vmem:[%s496 + $0xc4] sm:$0xf]
        %v737 = vld [vmem:[%s496 + $0xc8] sm:$0xf]
        %v738 = vld [vmem:[%s496 + $0xcc] sm:$0xf]
        %v739 = vld [vmem:[%s496 + $0xd0] sm:$0xf]
        %v740 = vld [vmem:[%s496 + $0xd4] sm:$0xf]
        %v741 = vld [vmem:[%s496 + $0xd8] sm:$0xf]
        %v742 = vld [vmem:[%s496 + $0xdc] sm:$0xf]
        %v743 = vld [vmem:[%s496 + $0xe0] sm:$0xf]
        %v744 = vld [vmem:[%s496 + $0xe4] sm:$0xf]
        %v745 = vld [vmem:[%s496 + $0xe8] sm:$0xf]
        %v746 = vld [vmem:[%s496 + $0xec] sm:$0xf]
        %v747 = vld [vmem:[%s496 + $0xf0] sm:$0xf]
        %v748 = vld [vmem:[%s496 + $0xf4] sm:$0xf]
        %v749 = vld [vmem:[%s496 + $0xf8] sm:$0xf]
        %v750 = vld [vmem:[%s496 + $0xfc] sm:$0xf]
        %v815 = vunpack.c.l.b16 %v623
        %v816 = vunpack.c.h.b16 %v623
        %v817 = vunpack.c.l.b16 %v624
        %v818 = vunpack.c.h.b16 %v624
        %v819 = vunpack.c.l.b16 %v625
        %v820 = vunpack.c.h.b16 %v625
        %v821 = vunpack.c.l.b16 %v626
        %v822 = vunpack.c.h.b16 %v626
        %v823 = vunpack.c.l.b16 %v627
        %v824 = vunpack.c.h.b16 %v627
        %v825 = vunpack.c.l.b16 %v628
        %v826 = vunpack.c.h.b16 %v628
        %v827 = vunpack.c.l.b16 %v629
        %v828 = vunpack.c.h.b16 %v629
        %v829 = vunpack.c.l.b16 %v630
        %v830 = vunpack.c.h.b16 %v630
        %v831 = vunpack.c.l.b16 %v631
        %v832 = vunpack.c.h.b16 %v631
        %v833 = vunpack.c.l.b16 %v632
        %v834 = vunpack.c.h.b16 %v632
        %v835 = vunpack.c.l.b16 %v633
        %v836 = vunpack.c.h.b16 %v633
        %v837 = vunpack.c.l.b16 %v634
        %v838 = vunpack.c.h.b16 %v634
        %v839 = vunpack.c.l.b16 %v635
        %v840 = vunpack.c.h.b16 %v635
        %v841 = vunpack.c.l.b16 %v636
        %v842 = vunpack.c.h.b16 %v636
        %v843 = vunpack.c.l.b16 %v637
        %v844 = vunpack.c.h.b16 %v637
        %v845 = vunpack.c.l.b16 %v638
        %v846 = vunpack.c.h.b16 %v638
        %v847 = vunpack.c.l.b16 %v639
        %v848 = vunpack.c.h.b16 %v639
        %v849 = vunpack.c.l.b16 %v640
        %v850 = vunpack.c.h.b16 %v640
        %v851 = vunpack.c.l.b16 %v641
        %v852 = vunpack.c.h.b16 %v641
        %v853 = vunpack.c.l.b16 %v642
        %v854 = vunpack.c.h.b16 %v642
        %v855 = vunpack.c.l.b16 %v643
        %v856 = vunpack.c.h.b16 %v643
        %v857 = vunpack.c.l.b16 %v644
        %v858 = vunpack.c.h.b16 %v644
        %v859 = vunpack.c.l.b16 %v645
        %v860 = vunpack.c.h.b16 %v645
        %v861 = vunpack.c.l.b16 %v646
        %v862 = vunpack.c.h.b16 %v646
        %v863 = vunpack.c.l.b16 %v647
        %v864 = vunpack.c.h.b16 %v647
        %v865 = vunpack.c.l.b16 %v648
        %v866 = vunpack.c.h.b16 %v648
        %v867 = vunpack.c.l.b16 %v649
        %v868 = vunpack.c.h.b16 %v649
        %v869 = vunpack.c.l.b16 %v650
        %v870 = vunpack.c.h.b16 %v650
        %v871 = vunpack.c.l.b16 %v651
        %v872 = vunpack.c.h.b16 %v651
        %v873 = vunpack.c.l.b16 %v652
        %v874 = vunpack.c.h.b16 %v652
        %v875 = vunpack.c.l.b16 %v653
        %v876 = vunpack.c.h.b16 %v653
        %v877 = vunpack.c.l.b16 %v654
        %v878 = vunpack.c.h.b16 %v654
        %v879 = vunpack.c.l.b16 %v655
        %v880 = vunpack.c.h.b16 %v655
        %v881 = vunpack.c.l.b16 %v656
        %v882 = vunpack.c.h.b16 %v656
        %v883 = vunpack.c.l.b16 %v657
        %v884 = vunpack.c.h.b16 %v657
        %v885 = vunpack.c.l.b16 %v658
        %v886 = vunpack.c.h.b16 %v658
        %v887 = vunpack.c.l.b16 %v659
        %v888 = vunpack.c.h.b16 %v659
        %v889 = vunpack.c.l.b16 %v660
        %v890 = vunpack.c.h.b16 %v660
        %v891 = vunpack.c.l.b16 %v661
        %v892 = vunpack.c.h.b16 %v661
        %v893 = vunpack.c.l.b16 %v662
        %v894 = vunpack.c.h.b16 %v662
        %v895 = vunpack.c.l.b16 %v663
        %v896 = vunpack.c.h.b16 %v663
        %v897 = vunpack.c.l.b16 %v664
        %v898 = vunpack.c.h.b16 %v664
        %v899 = vunpack.c.l.b16 %v665
        %v900 = vunpack.c.h.b16 %v665
        %v901 = vunpack.c.l.b16 %v666
        %v902 = vunpack.c.h.b16 %v666
        %v903 = vunpack.c.l.b16 %v667
        %v904 = vunpack.c.h.b16 %v667
        %v905 = vunpack.c.l.b16 %v668
        %v906 = vunpack.c.h.b16 %v668
        %v907 = vunpack.c.l.b16 %v669
        %v908 = vunpack.c.h.b16 %v669
        %v909 = vunpack.c.l.b16 %v670
        %v910 = vunpack.c.h.b16 %v670
        %v911 = vunpack.c.l.b16 %v671
        %v912 = vunpack.c.h.b16 %v671
        %v913 = vunpack.c.l.b16 %v672
        %v914 = vunpack.c.h.b16 %v672
        %v915 = vunpack.c.l.b16 %v673
        %v916 = vunpack.c.h.b16 %v673
        %v917 = vunpack.c.l.b16 %v674
        %v918 = vunpack.c.h.b16 %v674
        %v919 = vunpack.c.l.b16 %v675
        %v920 = vunpack.c.h.b16 %v675
        %v921 = vunpack.c.l.b16 %v676
        %v922 = vunpack.c.h.b16 %v676
        %v923 = vunpack.c.l.b16 %v677
        %v924 = vunpack.c.h.b16 %v677
        %v925 = vunpack.c.l.b16 %v678
        %v926 = vunpack.c.h.b16 %v678
        %v927 = vunpack.c.l.b16 %v679
        %v928 = vunpack.c.h.b16 %v679
        %v929 = vunpack.c.l.b16 %v680
        %v930 = vunpack.c.h.b16 %v680
        %v931 = vunpack.c.l.b16 %v681
        %v932 = vunpack.c.h.b16 %v681
        %v933 = vunpack.c.l.b16 %v682
        %v934 = vunpack.c.h.b16 %v682
        %v935 = vunpack.c.l.b16 %v683
        %v936 = vunpack.c.h.b16 %v683
        %v937 = vunpack.c.l.b16 %v684
        %v938 = vunpack.c.h.b16 %v684
        %v939 = vunpack.c.l.b16 %v685
        %v940 = vunpack.c.h.b16 %v685
        %v941 = vunpack.c.l.b16 %v686
        %v942 = vunpack.c.h.b16 %v686
        %v943 = vpack.c.b16 %v819, %v815
        %v944 = vpack.c.b16 %v820, %v816
        %v945 = vpack.c.b16 %v821, %v817
        %v946 = vpack.c.b16 %v822, %v818
        %v947 = vpack.c.b16 %v827, %v823
        %v948 = vpack.c.b16 %v828, %v824
        %v949 = vpack.c.b16 %v829, %v825
        %v950 = vpack.c.b16 %v830, %v826
        %v951 = vpack.c.b16 %v835, %v831
        %v952 = vpack.c.b16 %v836, %v832
        %v953 = vpack.c.b16 %v837, %v833
        %v954 = vpack.c.b16 %v838, %v834
        %v955 = vpack.c.b16 %v843, %v839
        %v956 = vpack.c.b16 %v844, %v840
        %v957 = vpack.c.b16 %v845, %v841
        %v958 = vpack.c.b16 %v846, %v842
        %v959 = vpack.c.b16 %v851, %v847
        %v960 = vpack.c.b16 %v852, %v848
        %v961 = vpack.c.b16 %v853, %v849
        %v962 = vpack.c.b16 %v854, %v850
        %v963 = vpack.c.b16 %v859, %v855
        %v964 = vpack.c.b16 %v860, %v856
        %v965 = vpack.c.b16 %v861, %v857
        %v966 = vpack.c.b16 %v862, %v858
        %v967 = vpack.c.b16 %v867, %v863
        %v968 = vpack.c.b16 %v868, %v864
        %v969 = vpack.c.b16 %v869, %v865
        %v970 = vpack.c.b16 %v870, %v866
        %v971 = vpack.c.b16 %v875, %v871
        %v972 = vpack.c.b16 %v876, %v872
        %v973 = vpack.c.b16 %v877, %v873
        %v974 = vpack.c.b16 %v878, %v874
        %v975 = vpack.c.b16 %v883, %v879
        %v976 = vpack.c.b16 %v884, %v880
        %v977 = vpack.c.b16 %v885, %v881
        %v978 = vpack.c.b16 %v886, %v882
        %v979 = vpack.c.b16 %v891, %v887
        %v980 = vpack.c.b16 %v892, %v888
        %v981 = vpack.c.b16 %v893, %v889
        %v982 = vpack.c.b16 %v894, %v890
        %v983 = vpack.c.b16 %v899, %v895
        %v984 = vpack.c.b16 %v900, %v896
        %v985 = vpack.c.b16 %v901, %v897
        %v986 = vpack.c.b16 %v902, %v898
        %v987 = vpack.c.b16 %v907, %v903
        %v988 = vpack.c.b16 %v908, %v904
        %v989 = vpack.c.b16 %v909, %v905
        %v990 = vpack.c.b16 %v910, %v906
        %v991 = vpack.c.b16 %v915, %v911
        %v992 = vpack.c.b16 %v916, %v912
        %v993 = vpack.c.b16 %v917, %v913
        %v994 = vpack.c.b16 %v918, %v914
        %v995 = vpack.c.b16 %v923, %v919
        %v996 = vpack.c.b16 %v924, %v920
        %v997 = vpack.c.b16 %v925, %v921
        %v998 = vpack.c.b16 %v926, %v922
        %v999 = vpack.c.b16 %v931, %v927
        %v1000 = vpack.c.b16 %v932, %v928
        %v1001 = vpack.c.b16 %v933, %v929
        %v1002 = vpack.c.b16 %v934, %v930
        %v1003 = vpack.c.b16 %v939, %v935
        %v1004 = vpack.c.b16 %v940, %v936
        %v1005 = vpack.c.b16 %v941, %v937
        %v1006 = vpack.c.b16 %v942, %v938
        %v1135 = vunpack.c.l.b16 %v687
        %v1136 = vunpack.c.l.b16 %v688
        %v1137 = vunpack.c.l.b16 %v689
        %v1138 = vunpack.c.l.b16 %v690
        %v1139 = vunpack.c.l.b16 %v691
        %v1140 = vunpack.c.l.b16 %v692
        %v1141 = vunpack.c.l.b16 %v693
        %v1142 = vunpack.c.l.b16 %v694
        %v1143 = vunpack.c.l.b16 %v695
        %v1144 = vunpack.c.l.b16 %v696
        %v1145 = vunpack.c.l.b16 %v697
        %v1146 = vunpack.c.l.b16 %v698
        %v1147 = vunpack.c.l.b16 %v699
        %v1148 = vunpack.c.l.b16 %v700
        %v1149 = vunpack.c.l.b16 %v701
        %v1150 = vunpack.c.l.b16 %v702
        %v1151 = vunpack.c.l.b16 %v703
        %v1152 = vunpack.c.l.b16 %v704
        %v1153 = vunpack.c.l.b16 %v705
        %v1154 = vunpack.c.l.b16 %v706
        %v1155 = vunpack.c.l.b16 %v707
        %v1156 = vunpack.c.l.b16 %v708
        %v1157 = vunpack.c.l.b16 %v709
        %v1158 = vunpack.c.l.b16 %v710
        %v1159 = vunpack.c.l.b16 %v711
        %v1160 = vunpack.c.l.b16 %v712
        %v1161 = vunpack.c.l.b16 %v713
        %v1162 = vunpack.c.l.b16 %v714
        %v1163 = vunpack.c.l.b16 %v715
        %v1164 = vunpack.c.l.b16 %v716
        %v1165 = vunpack.c.l.b16 %v717
        %v1166 = vunpack.c.l.b16 %v718
        %v1167 = vunpack.c.l.b16 %v719
        %v1168 = vunpack.c.l.b16 %v720
        %v1169 = vunpack.c.l.b16 %v721
        %v1170 = vunpack.c.l.b16 %v722
        %v1171 = vunpack.c.l.b16 %v723
        %v1172 = vunpack.c.l.b16 %v724
        %v1173 = vunpack.c.l.b16 %v725
        %v1174 = vunpack.c.l.b16 %v726
        %v1175 = vunpack.c.l.b16 %v727
        %v1176 = vunpack.c.l.b16 %v728
        %v1177 = vunpack.c.l.b16 %v729
        %v1178 = vunpack.c.l.b16 %v730
        %v1179 = vunpack.c.l.b16 %v731
        %v1180 = vunpack.c.l.b16 %v732
        %v1181 = vunpack.c.l.b16 %v733
        %v1182 = vunpack.c.l.b16 %v734
        %v1183 = vunpack.c.l.b16 %v735
        %v1184 = vunpack.c.l.b16 %v736
        %v1185 = vunpack.c.l.b16 %v737
        %v1186 = vunpack.c.l.b16 %v738
        %v1187 = vunpack.c.l.b16 %v739
        %v1188 = vunpack.c.l.b16 %v740
        %v1189 = vunpack.c.l.b16 %v741
        %v1190 = vunpack.c.l.b16 %v742
        %v1191 = vunpack.c.l.b16 %v743
        %v1192 = vunpack.c.l.b16 %v744
        %v1193 = vunpack.c.l.b16 %v745
        %v1194 = vunpack.c.l.b16 %v746
        %v1195 = vunpack.c.l.b16 %v747
        %v1196 = vunpack.c.l.b16 %v748
        %v1197 = vunpack.c.l.b16 %v749
        %v1198 = vunpack.c.l.b16 %v750
        %v1199 = vpack.c.b16 %v1136, %v1135
        %v1200 = vpack.c.b16 %v1138, %v1137
        %v1201 = vpack.c.b16 %v1140, %v1139
        %v1202 = vpack.c.b16 %v1142, %v1141
        %v1203 = vpack.c.b16 %v1144, %v1143
        %v1204 = vpack.c.b16 %v1146, %v1145
        %v1205 = vpack.c.b16 %v1148, %v1147
        %v1206 = vpack.c.b16 %v1150, %v1149
        %v1207 = vpack.c.b16 %v1152, %v1151
        %v1208 = vpack.c.b16 %v1154, %v1153
        %v1209 = vpack.c.b16 %v1156, %v1155
        %v1210 = vpack.c.b16 %v1158, %v1157
        %v1211 = vpack.c.b16 %v1160, %v1159
        %v1212 = vpack.c.b16 %v1162, %v1161
        %v1213 = vpack.c.b16 %v1164, %v1163
        %v1214 = vpack.c.b16 %v1166, %v1165
        %v1215 = vpack.c.b16 %v1168, %v1167
        %v1216 = vpack.c.b16 %v1170, %v1169
        %v1217 = vpack.c.b16 %v1172, %v1171
        %v1218 = vpack.c.b16 %v1174, %v1173
        %v1219 = vpack.c.b16 %v1176, %v1175
        %v1220 = vpack.c.b16 %v1178, %v1177
        %v1221 = vpack.c.b16 %v1180, %v1179
        %v1222 = vpack.c.b16 %v1182, %v1181
        %v1223 = vpack.c.b16 %v1184, %v1183
        %v1224 = vpack.c.b16 %v1186, %v1185
        %v1225 = vpack.c.b16 %v1188, %v1187
        %v1226 = vpack.c.b16 %v1190, %v1189
        %v1227 = vpack.c.b16 %v1192, %v1191
        %v1228 = vpack.c.b16 %v1194, %v1193
        %v1229 = vpack.c.b16 %v1196, %v1195
        %v1230 = vpack.c.b16 %v1198, %v1197
        %1263 = vmatprep.subr.bf16.mxu0 0
        %1264 = vmatpush1.bf16.msra.mxu0 %v1206
        %1265 = vmatprep.subr.bf16.mxu0 0
        %1266 = vmatpush1.bf16.msra.mxu0 %v1205
        %1267 = vmatprep.subr.bf16.mxu0 0
        %1268 = vmatpush1.bf16.msra.mxu0 %v1204
        %1269 = vmatprep.subr.bf16.mxu0 0
        %1270 = vmatpush1.bf16.msra.mxu0 %v1203
        %1271 = vmatprep.subr.bf16.mxu0 0
        %1272 = vmatpush1.bf16.msra.mxu0 %v1202
        %1273 = vmatprep.subr.bf16.mxu0 0
        %1274 = vmatpush1.bf16.msra.mxu0 %v1201
        %1275 = vmatprep.subr.bf16.mxu0 0
        %1276 = vmatpush1.bf16.msra.mxu0 %v1200
        %1277 = vmatprep.subr.bf16.mxu0 0
        %1278 = vmatpush1.bf16.msra.mxu0 %v1199
        %1279 = vmatprep.subr.bf16.mxu0 0
        %1280 = vmatpush2.bf16.msra.mxu0 %v1214
        %1281 = vmatprep.subr.bf16.mxu0 0
        %1282 = vmatpush2.bf16.msra.mxu0 %v1213
        %1283 = vmatprep.subr.bf16.mxu0 0
        %1284 = vmatpush2.bf16.msra.mxu0 %v1212
        %1285 = vmatprep.subr.bf16.mxu0 0
        %1286 = vmatpush2.bf16.msra.mxu0 %v1211
        %1287 = vmatprep.subr.bf16.mxu0 0
        %1288 = vmatpush2.bf16.msra.mxu0 %v1210
        %1289 = vmatprep.subr.bf16.mxu0 0
        %1290 = vmatpush2.bf16.msra.mxu0 %v1209
        %1291 = vmatprep.subr.bf16.mxu0 0
        %1292 = vmatpush2.bf16.msra.mxu0 %v1208
        %1293 = vmatprep.subr.bf16.mxu0 0
        %1294 = vmatpush2.bf16.msra.mxu0 %v1207
        %1295 = vmatprep.mubr.bf16.mxu0 %v944
        %1296 = vmatmul.mubr.bf16.gmra.mxu0 %v943
        %v1297 = vpop.f32.mrf.mxu0
        %v1298 = vadd.f32 0.0, %v1297
        %v1299 = vpop.f32.mrf.mxu0
        %v1300 = vpop.f32.mrf.mxu0
        %v1301 = vadd.f32 0.0, %v1300
        %v1302 = vpop.f32.mrf.mxu0
        %1303 = vmatprep.mubr.bf16.mxu0 %v948
        %1304 = vmatmul.mubr.bf16.gmra.mxu0 %v947
        %v1305 = vpop.f32.mrf.mxu0
        %v1306 = vadd.f32 0.0, %v1305
        %v1307 = vpop.f32.mrf.mxu0
        %v1308 = vpop.f32.mrf.mxu0
        %v1309 = vadd.f32 0.0, %v1308
        %v1310 = vpop.f32.mrf.mxu0
        %1311 = vmatprep.mubr.bf16.mxu0 %v952
        %1312 = vmatmul.mubr.bf16.gmra.mxu0 %v951
        %v1313 = vpop.f32.mrf.mxu0
        %v1314 = vadd.f32 0.0, %v1313
        %v1315 = vpop.f32.mrf.mxu0
        %v1316 = vpop.f32.mrf.mxu0
        %v1317 = vadd.f32 0.0, %v1316
        %v1318 = vpop.f32.mrf.mxu0
        %1319 = vmatprep.mubr.bf16.mxu0 %v956
        %1320 = vmatmul.mubr.bf16.gmra.mxu0 %v955
        %v1321 = vpop.f32.mrf.mxu0
        %v1322 = vadd.f32 0.0, %v1321
        %v1323 = vpop.f32.mrf.mxu0
        %v1324 = vpop.f32.mrf.mxu0
        %v1325 = vadd.f32 0.0, %v1324
        %v1326 = vpop.f32.mrf.mxu0
        %1327 = vmatprep.mubr.bf16.mxu0 %v960
        %1328 = vmatmul.mubr.bf16.gmra.mxu0 %v959
        %v1329 = vpop.f32.mrf.mxu0
        %v1330 = vadd.f32 0.0, %v1329
        %v1331 = vpop.f32.mrf.mxu0
        %v1332 = vpop.f32.mrf.mxu0
        %v1333 = vadd.f32 0.0, %v1332
        %v1334 = vpop.f32.mrf.mxu0
        %1335 = vmatprep.mubr.bf16.mxu0 %v964
        %1336 = vmatmul.mubr.bf16.gmra.mxu0 %v963
        %v1337 = vpop.f32.mrf.mxu0
        %v1338 = vadd.f32 0.0, %v1337
        %v1339 = vpop.f32.mrf.mxu0
        %v1340 = vpop.f32.mrf.mxu0
        %v1341 = vadd.f32 0.0, %v1340
        %v1342 = vpop.f32.mrf.mxu0
        %1343 = vmatprep.mubr.bf16.mxu0 %v968
        %1344 = vmatmul.mubr.bf16.gmra.mxu0 %v967
        %v1345 = vpop.f32.mrf.mxu0
        %v1346 = vadd.f32 0.0, %v1345
        %v1347 = vpop.f32.mrf.mxu0
        %v1348 = vpop.f32.mrf.mxu0
        %v1349 = vadd.f32 0.0, %v1348
        %v1350 = vpop.f32.mrf.mxu0
        %1351 = vmatprep.mubr.bf16.mxu0 %v972
        %1352 = vmatmul.mubr.bf16.gmra.mxu0 %v971
        %v1353 = vpop.f32.mrf.mxu0
        %v1354 = vadd.f32 0.0, %v1353
        %v1355 = vpop.f32.mrf.mxu0
        %v1356 = vpop.f32.mrf.mxu0
        %v1357 = vadd.f32 0.0, %v1356
        %v1358 = vpop.f32.mrf.mxu0
        %1359 = vmatprep.mubr.bf16.mxu0 %v976
        %1360 = vmatmul.mubr.bf16.gmra.mxu0 %v975
        %v1361 = vpop.f32.mrf.mxu0
        %v1362 = vadd.f32 0.0, %v1361
        %v1363 = vpop.f32.mrf.mxu0
        %v1364 = vpop.f32.mrf.mxu0
        %v1365 = vadd.f32 0.0, %v1364
        %v1366 = vpop.f32.mrf.mxu0
        %1367 = vmatprep.mubr.bf16.mxu0 %v980
        %1368 = vmatmul.mubr.bf16.gmra.mxu0 %v979
        %v1369 = vpop.f32.mrf.mxu0
        %v1370 = vadd.f32 0.0, %v1369
        %v1371 = vpop.f32.mrf.mxu0
        %v1372 = vpop.f32.mrf.mxu0
        %v1373 = vadd.f32 0.0, %v1372
        %v1374 = vpop.f32.mrf.mxu0
        %1375 = vmatprep.mubr.bf16.mxu0 %v984
        %1376 = vmatmul.mubr.bf16.gmra.mxu0 %v983
        %v1377 = vpop.f32.mrf.mxu0
        %v1378 = vadd.f32 0.0, %v1377
        %v1379 = vpop.f32.mrf.mxu0
        %v1380 = vpop.f32.mrf.mxu0
        %v1381 = vadd.f32 0.0, %v1380
        %v1382 = vpop.f32.mrf.mxu0
        %1383 = vmatprep.mubr.bf16.mxu0 %v988
        %1384 = vmatmul.mubr.bf16.gmra.mxu0 %v987
        %v1385 = vpop.f32.mrf.mxu0
        %v1386 = vadd.f32 0.0, %v1385
        %v1387 = vpop.f32.mrf.mxu0
        %v1388 = vpop.f32.mrf.mxu0
        %v1389 = vadd.f32 0.0, %v1388
        %v1390 = vpop.f32.mrf.mxu0
        %1391 = vmatprep.mubr.bf16.mxu0 %v992
        %1392 = vmatmul.mubr.bf16.gmra.mxu0 %v991
        %v1393 = vpop.f32.mrf.mxu0
        %v1394 = vadd.f32 0.0, %v1393
        %v1395 = vpop.f32.mrf.mxu0
        %v1396 = vpop.f32.mrf.mxu0
        %v1397 = vadd.f32 0.0, %v1396
        %v1398 = vpop.f32.mrf.mxu0
        %1399 = vmatprep.mubr.bf16.mxu0 %v996
        %1400 = vmatmul.mubr.bf16.gmra.mxu0 %v995
        %v1401 = vpop.f32.mrf.mxu0
        %v1402 = vadd.f32 0.0, %v1401
        %v1403 = vpop.f32.mrf.mxu0
        %v1404 = vpop.f32.mrf.mxu0
        %v1405 = vadd.f32 0.0, %v1404
        %v1406 = vpop.f32.mrf.mxu0
        %1407 = vmatprep.mubr.bf16.mxu0 %v1000
        %1408 = vmatmul.mubr.bf16.gmra.mxu0 %v999
        %v1409 = vpop.f32.mrf.mxu0
        %v1410 = vadd.f32 0.0, %v1409
        %v1411 = vpop.f32.mrf.mxu0
        %v1412 = vpop.f32.mrf.mxu0
        %v1413 = vadd.f32 0.0, %v1412
        %v1414 = vpop.f32.mrf.mxu0
        %1415 = vmatprep.mubr.bf16.mxu0 %v1004
        %1416 = vmatmul.mubr.bf16.gmra.mxu0 %v1003
        %v1417 = vpop.f32.mrf.mxu0
        %v1418 = vadd.f32 0.0, %v1417
        %v1419 = vpop.f32.mrf.mxu0
        %v1420 = vpop.f32.mrf.mxu0
        %v1421 = vadd.f32 0.0, %v1420
        %v1422 = vpop.f32.mrf.mxu0
        %1423 = vdwg.mxu0
        %1424 = vmatprep.subr.bf16.mxu0 0
        %1425 = vmatpush1.bf16.msra.mxu0 %v1222
        %1426 = vmatprep.subr.bf16.mxu0 0
        %1427 = vmatpush1.bf16.msra.mxu0 %v1221
        %1428 = vmatprep.subr.bf16.mxu0 0
        %1429 = vmatpush1.bf16.msra.mxu0 %v1220
        %1430 = vmatprep.subr.bf16.mxu0 0
        %1431 = vmatpush1.bf16.msra.mxu0 %v1219
        %1432 = vmatprep.subr.bf16.mxu0 0
        %1433 = vmatpush1.bf16.msra.mxu0 %v1218
        %1434 = vmatprep.subr.bf16.mxu0 0
        %1435 = vmatpush1.bf16.msra.mxu0 %v1217
        %1436 = vmatprep.subr.bf16.mxu0 0
        %1437 = vmatpush1.bf16.msra.mxu0 %v1216
        %1438 = vmatprep.subr.bf16.mxu0 0
        %1439 = vmatpush1.bf16.msra.mxu0 %v1215
        %1440 = vmatprep.subr.bf16.mxu0 0
        %1441 = vmatpush2.bf16.msra.mxu0 %v1230
        %1442 = vmatprep.subr.bf16.mxu0 0
        %1443 = vmatpush2.bf16.msra.mxu0 %v1229
        %1444 = vmatprep.subr.bf16.mxu0 0
        %1445 = vmatpush2.bf16.msra.mxu0 %v1228
        %1446 = vmatprep.subr.bf16.mxu0 0
        %1447 = vmatpush2.bf16.msra.mxu0 %v1227
        %1448 = vmatprep.subr.bf16.mxu0 0
        %1449 = vmatpush2.bf16.msra.mxu0 %v1226
        %1450 = vmatprep.subr.bf16.mxu0 0
        %1451 = vmatpush2.bf16.msra.mxu0 %v1225
        %1452 = vmatprep.subr.bf16.mxu0 0
        %1453 = vmatpush2.bf16.msra.mxu0 %v1224
        %1454 = vmatprep.subr.bf16.mxu0 0
        %1455 = vmatpush2.bf16.msra.mxu0 %v1223
        %1456 = vmatprep.mubr.bf16.mxu0 %v946
        %1457 = vmatmul.mubr.bf16.gmra.mxu0 %v945
        %v1458 = vpop.f32.mrf.mxu0
        %v1459 = vadd.f32 %v1298, %v1458
        %v1460 = vpop.f32.mrf.mxu0
        %v1461 = vpop.f32.mrf.mxu0
        %v1462 = vadd.f32 %v1301, %v1461
        %v1463 = vpop.f32.mrf.mxu0
        %1464 = vmatprep.mubr.bf16.mxu0 %v950
        %1465 = vmatmul.mubr.bf16.gmra.mxu0 %v949
        %v1466 = vpop.f32.mrf.mxu0
        %v1467 = vadd.f32 %v1306, %v1466
        %v1468 = vpop.f32.mrf.mxu0
        %v1469 = vpop.f32.mrf.mxu0
        %v1470 = vadd.f32 %v1309, %v1469
        %v1471 = vpop.f32.mrf.mxu0
        %1472 = vmatprep.mubr.bf16.mxu0 %v954
        %1473 = vmatmul.mubr.bf16.gmra.mxu0 %v953
        %v1474 = vpop.f32.mrf.mxu0
        %v1475 = vadd.f32 %v1314, %v1474
        %v1476 = vpop.f32.mrf.mxu0
        %v1477 = vpop.f32.mrf.mxu0
        %v1478 = vadd.f32 %v1317, %v1477
        %v1479 = vpop.f32.mrf.mxu0
        %1480 = vmatprep.mubr.bf16.mxu0 %v958
        %1481 = vmatmul.mubr.bf16.gmra.mxu0 %v957
        %v1482 = vpop.f32.mrf.mxu0
        %v1483 = vadd.f32 %v1322, %v1482
        %v1484 = vpop.f32.mrf.mxu0
        %v1485 = vpop.f32.mrf.mxu0
        %v1486 = vadd.f32 %v1325, %v1485
        %v1487 = vpop.f32.mrf.mxu0
        %1488 = vmatprep.mubr.bf16.mxu0 %v962
        %1489 = vmatmul.mubr.bf16.gmra.mxu0 %v961
        %v1490 = vpop.f32.mrf.mxu0
        %v1491 = vadd.f32 %v1330, %v1490
        %v1492 = vpop.f32.mrf.mxu0
        %v1493 = vpop.f32.mrf.mxu0
        %v1494 = vadd.f32 %v1333, %v1493
        %v1495 = vpop.f32.mrf.mxu0
        %1496 = vmatprep.mubr.bf16.mxu0 %v966
        %1497 = vmatmul.mubr.bf16.gmra.mxu0 %v965
        %v1498 = vpop.f32.mrf.mxu0
        %v1499 = vadd.f32 %v1338, %v1498
        %v1500 = vpop.f32.mrf.mxu0
        %v1501 = vpop.f32.mrf.mxu0
        %v1502 = vadd.f32 %v1341, %v1501
        %v1503 = vpop.f32.mrf.mxu0
        %1504 = vmatprep.mubr.bf16.mxu0 %v970
        %1505 = vmatmul.mubr.bf16.gmra.mxu0 %v969
        %v1506 = vpop.f32.mrf.mxu0
        %v1507 = vadd.f32 %v1346, %v1506
        %v1508 = vpop.f32.mrf.mxu0
        %v1509 = vpop.f32.mrf.mxu0
        %v1510 = vadd.f32 %v1349, %v1509
        %v1511 = vpop.f32.mrf.mxu0
        %1512 = vmatprep.mubr.bf16.mxu0 %v974
        %1513 = vmatmul.mubr.bf16.gmra.mxu0 %v973
        %v1514 = vpop.f32.mrf.mxu0
        %v1515 = vadd.f32 %v1354, %v1514
        %v1516 = vpop.f32.mrf.mxu0
        %v1517 = vpop.f32.mrf.mxu0
        %v1518 = vadd.f32 %v1357, %v1517
        %v1519 = vpop.f32.mrf.mxu0
        %1520 = vmatprep.mubr.bf16.mxu0 %v978
        %1521 = vmatmul.mubr.bf16.gmra.mxu0 %v977
        %v1522 = vpop.f32.mrf.mxu0
        %v1523 = vadd.f32 %v1362, %v1522
        %v1524 = vpop.f32.mrf.mxu0
        %v1525 = vpop.f32.mrf.mxu0
        %v1526 = vadd.f32 %v1365, %v1525
        %v1527 = vpop.f32.mrf.mxu0
        %1528 = vmatprep.mubr.bf16.mxu0 %v982
        %1529 = vmatmul.mubr.bf16.gmra.mxu0 %v981
        %v1530 = vpop.f32.mrf.mxu0
        %v1531 = vadd.f32 %v1370, %v1530
        %v1532 = vpop.f32.mrf.mxu0
        %v1533 = vpop.f32.mrf.mxu0
        %v1534 = vadd.f32 %v1373, %v1533
        %v1535 = vpop.f32.mrf.mxu0
        %1536 = vmatprep.mubr.bf16.mxu0 %v986
        %1537 = vmatmul.mubr.bf16.gmra.mxu0 %v985
        %v1538 = vpop.f32.mrf.mxu0
        %v1539 = vadd.f32 %v1378, %v1538
        %v1540 = vpop.f32.mrf.mxu0
        %v1541 = vpop.f32.mrf.mxu0
        %v1542 = vadd.f32 %v1381, %v1541
        %v1543 = vpop.f32.mrf.mxu0
        %1544 = vmatprep.mubr.bf16.mxu0 %v990
        %1545 = vmatmul.mubr.bf16.gmra.mxu0 %v989
        %v1546 = vpop.f32.mrf.mxu0
        %v1547 = vadd.f32 %v1386, %v1546
        %v1548 = vpop.f32.mrf.mxu0
        %v1549 = vpop.f32.mrf.mxu0
        %v1550 = vadd.f32 %v1389, %v1549
        %v1551 = vpop.f32.mrf.mxu0
        %1552 = vmatprep.mubr.bf16.mxu0 %v994
        %1553 = vmatmul.mubr.bf16.gmra.mxu0 %v993
        %v1554 = vpop.f32.mrf.mxu0
        %v1555 = vadd.f32 %v1394, %v1554
        %v1556 = vpop.f32.mrf.mxu0
        %v1557 = vpop.f32.mrf.mxu0
        %v1558 = vadd.f32 %v1397, %v1557
        %v1559 = vpop.f32.mrf.mxu0
        %1560 = vmatprep.mubr.bf16.mxu0 %v998
        %1561 = vmatmul.mubr.bf16.gmra.mxu0 %v997
        %v1562 = vpop.f32.mrf.mxu0
        %v1563 = vadd.f32 %v1402, %v1562
        %v1564 = vpop.f32.mrf.mxu0
        %v1565 = vpop.f32.mrf.mxu0
        %v1566 = vadd.f32 %v1405, %v1565
        %v1567 = vpop.f32.mrf.mxu0
        %1568 = vmatprep.mubr.bf16.mxu0 %v1002
        %1569 = vmatmul.mubr.bf16.gmra.mxu0 %v1001
        %v1570 = vpop.f32.mrf.mxu0
        %v1571 = vadd.f32 %v1410, %v1570
        %v1572 = vpop.f32.mrf.mxu0
        %v1573 = vpop.f32.mrf.mxu0
        %v1574 = vadd.f32 %v1413, %v1573
        %v1575 = vpop.f32.mrf.mxu0
        %1576 = vmatprep.mubr.bf16.mxu0 %v1006
        %1577 = vmatmul.mubr.bf16.gmra.mxu0 %v1005
        %v1578 = vpop.f32.mrf.mxu0
        %v1579 = vadd.f32 %v1418, %v1578
        %v1580 = vpop.f32.mrf.mxu0
        %v1581 = vpop.f32.mrf.mxu0
        %v1582 = vadd.f32 %v1421, %v1581
        %v1583 = vpop.f32.mrf.mxu0
        %1584 = vdwg.mxu0
        %v1585 = vadd.f32 %v591, %v1459
        %v1586 = vadd.f32 %v592, %v1462
        %v1587 = vadd.f32 %v593, %v1467
        %v1588 = vadd.f32 %v594, %v1470
        %v1589 = vadd.f32 %v595, %v1475
        %v1590 = vadd.f32 %v596, %v1478
        %v1591 = vadd.f32 %v597, %v1483
        %v1592 = vadd.f32 %v598, %v1486
        %v1593 = vadd.f32 %v599, %v1491
        %v1594 = vadd.f32 %v600, %v1494
        %v1595 = vadd.f32 %v601, %v1499
        %v1596 = vadd.f32 %v602, %v1502
        %v1597 = vadd.f32 %v603, %v1507
        %v1598 = vadd.f32 %v604, %v1510
        %v1599 = vadd.f32 %v605, %v1515
        %v1600 = vadd.f32 %v606, %v1518
        %v1601 = vadd.f32 %v607, %v1523
        %v1602 = vadd.f32 %v608, %v1526
        %v1603 = vadd.f32 %v609, %v1531
        %v1604 = vadd.f32 %v610, %v1534
        %v1605 = vadd.f32 %v611, %v1539
        %v1606 = vadd.f32 %v612, %v1542
        %v1607 = vadd.f32 %v613, %v1547
        %v1608 = vadd.f32 %v614, %v1550
        %v1609 = vadd.f32 %v615, %v1555
        %v1610 = vadd.f32 %v616, %v1558
        %v1611 = vadd.f32 %v617, %v1563
        %v1612 = vadd.f32 %v618, %v1566
        %v1613 = vadd.f32 %v619, %v1571
        %v1614 = vadd.f32 %v620, %v1574
        %v1615 = vadd.f32 %v621, %v1579
        %v1616 = vadd.f32 %v622, %v1582
        %1617 = vst [vmem:[%s529] sm:$0xff] %v1585
        %1618 = vst [vmem:[%s529 + $0x8] sm:$0xff] %v1586
        %1619 = vst [vmem:[%s529 + $0x10] sm:$0xff] %v1587
        %1620 = vst [vmem:[%s529 + $0x18] sm:$0xff] %v1588
        %1621 = vst [vmem:[%s529 + $0x20] sm:$0xff] %v1589
        %1622 = vst [vmem:[%s529 + $0x28] sm:$0xff] %v1590
        %1623 = vst [vmem:[%s529 + $0x30] sm:$0xff] %v1591
        %1624 = vst [vmem:[%s529 + $0x38] sm:$0xff] %v1592
        %1625 = vst [vmem:[%s529 + $0x40] sm:$0xff] %v1593
        %1626 = vst [vmem:[%s529 + $0x48] sm:$0xff] %v1594
        %1627 = vst [vmem:[%s529 + $0x50] sm:$0xff] %v1595
        %1628 = vst [vmem:[%s529 + $0x58] sm:$0xff] %v1596
        %1629 = vst [vmem:[%s529 + $0x60] sm:$0xff] %v1597
        %1630 = vst [vmem:[%s529 + $0x68] sm:$0xff] %v1598
        %1631 = vst [vmem:[%s529 + $0x70] sm:$0xff] %v1599
        %1632 = vst [vmem:[%s529 + $0x78] sm:$0xff] %v1600
        %1633 = vst [vmem:[%s529 + $0x80] sm:$0xff] %v1601
        %1634 = vst [vmem:[%s529 + $0x88] sm:$0xff] %v1602
        %1635 = vst [vmem:[%s529 + $0x90] sm:$0xff] %v1603
        %1636 = vst [vmem:[%s529 + $0x98] sm:$0xff] %v1604
        %1637 = vst [vmem:[%s529 + $0xa0] sm:$0xff] %v1605
        %1638 = vst [vmem:[%s529 + $0xa8] sm:$0xff] %v1606
        %1639 = vst [vmem:[%s529 + $0xb0] sm:$0xff] %v1607
        %1640 = vst [vmem:[%s529 + $0xb8] sm:$0xff] %v1608
        %1641 = vst [vmem:[%s529 + $0xc0] sm:$0xff] %v1609
        %1642 = vst [vmem:[%s529 + $0xc8] sm:$0xff] %v1610
        %1643 = vst [vmem:[%s529 + $0xd0] sm:$0xff] %v1611
        %1644 = vst [vmem:[%s529 + $0xd8] sm:$0xff] %v1612
        %1645 = vst [vmem:[%s529 + $0xe0] sm:$0xff] %v1613
        %1646 = vst [vmem:[%s529 + $0xe8] sm:$0xff] %v1614
        %1647 = vst [vmem:[%s529 + $0xf0] sm:$0xff] %v1615
        %1648 = vst [vmem:[%s529 + $0xf8] sm:$0xff] %v1616
        %s1649 = sand.u32 %s128, 1
        %s1650 = scalar_lea.sflag [#allocation4], %s1649
        %s1651 = sand.u32 %s128, 1
        %s1652 = smul.addr %s1651, 256
        %s1653 = scalar_lea.vmem [#allocation3], %s1652
        // Predicated region
        $region78: #{linear_module.1} parent=68 // pred_check
          %p1654 = pneg %p138
        $region79: #{linear_module.1} parent=68 // pred_check_branch
          %1656 = sbr.rel (%p1654) target = $region81
        $region80: #{linear_module.1} parent=68 // pred_region
          %s1657 = smul.u32 32, %s22
          %s1659 = ssub.s32 4096, 4096
          %1660 = vsyncadd %s1650, %s1659
          %s1661 = smul.addr %s1657, 2
          %s1662 = sadd.s32 %s23, %s1661
          %s1663 = smul.addr %s1662, 128
          %s1664 = scalar_lea.hbm %s3, %s1663
          %s1665 = sshll.u32 %s1653, 4
          %s1666 = int_to_ptr.vmem [resolvable:$true] %s1665
          %1671 = dma.vmem_to_hbm [thread:$0]  %s1666, 4096, %s1664, %s1650, 128, 256, 8
        $region81: #{linear_module.1} parent=68 // pred_fallthru
          _
      $region69: #{linear_module.1} parent=5 // pred_fallthru
        _
      %p1672 = scmp.le.s32.totalorder 2, %s12
      // Predicated region
      $region82: #{linear_module.1} parent=5 // pred_check
        %p1673 = pneg %p1672
      $region83: #{linear_module.1} parent=5 // pred_check_branch
        %1675 = sbr.rel (%p1673) target = $region85
      $region84: #{linear_module.1} parent=5 // pred_region
        %s1676 = ssub.s32 %s12, 2
        // Predicated region
        $region86: #{linear_module.1} parent=84 // pred_check
          %p1677 = pneg %p144
        $region87: #{linear_module.1} parent=84 // pred_check_branch
          %1679 = sbr.rel (%p1677) target = $region89
        $region88: #{linear_module.1} parent=84 // pred_region
          %s1680 = sand.u32 %s129, 1
          %s1681 = scalar_lea.sflag [#allocation4], %s1680
          %s1682 = sand.u32 %s129, 1
          %s1683 = smul.addr %s1682, 256
          %s1684 = scalar_lea.vmem [#allocation3], %s1683
          %1685 = dma.done %s1681, 4096
        $region89: #{linear_module.1} parent=84 // pred_fallthru
          _
      $region85: #{linear_module.1} parent=5 // pred_fallthru
        _
    $region6: #{linear_module.1} parent=1 // loop_footer
      %s16 = sadd.s32 1, %s12
    $region7: #{linear_module.1} parent=1 // loop_footer_branch
      %11 = sbr.rel target = $region3
    $region8: #{linear_module.1} parent=1 // loop_exit
      _
    %1686 = vsyncpa [#allocation4], 1
    %s1687 = scalar_lea.sflag [#allocation4], 1
    %1688 = vsyncpa %s1687, 1

</llo_original>
